<compile_context>
chip_gen: v7x
topology: tpu7x:2x2x1
jax: 0.10.0
libtpu: 0.0.40
codegen_flags: <defaults>
</compile_context>

<pallas_src>
import functools

import jax
import jax.numpy as jnp
from jax.experimental import pallas as pl
from jax.experimental.pallas import tpu as pltpu

D_IN = 28 * 28     # 784
D_PAD = 896        # 784 padded to a multiple of 128 -> unmasked stores
H = 200
Z = 50
ZP = 128           # per-half (mu / log_sigma) lane padding -> aligned slices


def vae_kernel(x_ref, eps_ref, w1_ref, w2_ref, w3_ref, w4_ref, b_ref,
               w5_hbm, w6_hbm,
               out_ref, mls_ref,
               w5_vmem, w6_vmem, sem, *, B, k):
    f32 = jnp.float32
    BK = B * k

    # Kick off the decoder-weight DMAs immediately so they overlap the
    # encoder matmul chain (w5 + padded w6 are ~0.9 MB, the largest inputs).
    w5_cp = pltpu.make_async_copy(w5_hbm, w5_vmem, sem.at[0])
    w6_cp = pltpu.make_async_copy(w6_hbm, w6_vmem, sem.at[1])
    w5_cp.start()
    w6_cp.start()

    # ---------------- encoder: (B, 784) -> fused [mu | log_sigma] ----------
    x = x_ref[...]
    h = jnp.tanh(jnp.dot(x, w1_ref[...], preferred_element_type=f32)
                 + b_ref[0:1, :H])
    h = jnp.tanh(jnp.dot(h, w2_ref[...], preferred_element_type=f32)
                 + b_ref[1:2, :H])
    # Fused projection; mu in lanes [0, 50), log_sigma in lanes [128, 178).
    mls = jnp.dot(h, w3_ref[...], preferred_element_type=f32) + b_ref[2:3, :2 * ZP]
    mls_ref[...] = mls                                              # (B, 256)

    # ---------------- reparameterize all B*k samples (VPU only) ------------
    mu = mls[:, :Z]                           # aligned lane slice at 0
    sig = jnp.exp(mls[:, ZP:ZP + Z])          # aligned slice at 128, exp AFTER select
    row = jax.lax.broadcasted_iota(jnp.int32, (BK, Z), 0)
    mu_rep = jnp.zeros((BK, Z), f32)
    sig_rep = jnp.zeros((BK, Z), f32)
    for i in range(B):                        # static, tiny B
        m = (row >= i * k) & (row < (i + 1) * k)
        mu_rep = jnp.where(m, jnp.broadcast_to(mu[i:i + 1, :], (BK, Z)), mu_rep)
        sig_rep = jnp.where(m, jnp.broadcast_to(sig[i:i + 1, :], (BK, Z)), sig_rep)
    z = mu_rep + sig_rep * eps_ref[...]                             # (BK, Z)

    # ---------------- decoder: one (B*k, Z) matmul chain --------------------
    d = jnp.tanh(jnp.dot(z, w4_ref[...], preferred_element_type=f32)
                 + b_ref[3:4, :H])
    w5_cp.wait()
    d = jnp.tanh(jnp.dot(d, w5_vmem[...], preferred_element_type=f32)
                 + b_ref[4:5, :H])
    w6_cp.wait()
    # (BK, 896) lane-dense unmasked store; wrapper slices back to 784.
    out_ref[...] = (jnp.dot(d, w6_vmem[...], preferred_element_type=f32)
                    + b_ref[5:6, :])


def init_params(key):
    """Deterministic PyTorch-style init. Weights stored as (in, out)."""
    def linear(kk, fan_in, fan_out):
        kw, kb = jax.random.split(kk)
        bound = 1.0 / jnp.sqrt(fan_in)
        w = jax.random.uniform(kw, (fan_in, fan_out), jnp.float32, -bound, bound)
        b = jax.random.uniform(kb, (1, fan_out), jnp.float32, -bound, bound)
        return w, b

    keys = jax.random.split(key, 7)
    w1, b1 = linear(keys[0], D_IN, H)
    w2, b2 = linear(keys[1], H, H)
    w3m, b3m = linear(keys[2], H, Z)
    w3s, b3s = linear(keys[3], H, Z)
    w4, b4 = linear(keys[4], Z, H)
    w5, b5 = linear(keys[5], H, H)
    w6, b6 = linear(keys[6], H, D_IN)
    return (w1, b1, w2, b2, w3m, b3m, w3s, b3s, w4, b4, w5, b5, w6, b6)


def pack_params(params):
    """One-time, per-model packing (hoisted out of the per-call path)."""
    w1, b1, w2, b2, w3m, b3m, w3s, b3s, w4, b4, w5, b5, w6, b6 = params

    def pad_cols(a, n):
        return jnp.pad(a, ((0, 0), (0, n - a.shape[1])))

    # Fused [mu | log_sigma] projection, each half padded to 128 lanes.
    w3 = jnp.concatenate([pad_cols(w3m, ZP), pad_cols(w3s, ZP)], axis=1)  # (H, 256)
    b3 = jnp.concatenate([pad_cols(b3m, ZP), pad_cols(b3s, ZP)], axis=1)  # (1, 256)
    # Output projection padded to a lane-dense 896 columns.
    w6p = pad_cols(w6, D_PAD)                                             # (H, 896)
    b6p = pad_cols(b6, D_PAD)
    # All biases packed into a single (8, 896) slab -> one DMA instead of six.
    biases = jnp.concatenate(
        [pad_cols(b1, D_PAD), pad_cols(b2, D_PAD), pad_cols(b3, D_PAD),
         pad_cols(b4, D_PAD), pad_cols(b5, D_PAD), b6p,
         jnp.zeros((2, D_PAD), jnp.float32)], axis=0)                     # (8, 896)
    return (w1, w2, w3, w4, w5, w6p, biases)


def vae_forward(x, eps, kparams):
    """x: anything flattening to (B, 784); eps: (B, k, 50); kparams from pack_params."""
    w1, w2, w3, w4, w5, w6p, biases = kparams
    B, k, _ = eps.shape
    BK = B * k

    x2 = x.reshape(B, D_IN).astype(jnp.float32)
    eps2 = eps.reshape(BK, Z).astype(jnp.float32)

    vmem = pl.BlockSpec(memory_space=pltpu.MemorySpace.VMEM)
    hbm = pl.BlockSpec(memory_space=pl.ANY)

    in_arrays = (x2, eps2, w1, w2, w3, w4, biases, w5, w6p)
    in_specs = [vmem] * 7 + [hbm, hbm]

    out_shape = (jax.ShapeDtypeStruct((BK, D_PAD), jnp.float32),   # padded recon
                 jax.ShapeDtypeStruct((B, 2 * ZP), jnp.float32))   # [mu | log_sigma] padded
    out_specs = (vmem, vmem)

    flops = (2 * B * (D_IN * H + H * H + H * 2 * ZP)
             + 2 * BK * (Z * H + H * H + H * D_PAD))
    transcendentals = 2 * B * H + B * Z + 2 * BK * H
    bytes_accessed = 4 * (sum(int(a.size) for a in in_arrays)
                          + BK * D_PAD + B * 2 * ZP)

    out_pad, mls = pl.pallas_call(
        functools.partial(vae_kernel, B=B, k=k),
        out_shape=out_shape,
        in_specs=in_specs,
        out_specs=out_specs,
        scratch_shapes=[pltpu.VMEM((H, H), jnp.float32),        # w5 landing buffer
                        pltpu.VMEM((H, D_PAD), jnp.float32),    # w6 landing buffer
                        pltpu.SemaphoreType.DMA((2,))],
        cost_estimate=pl.CostEstimate(flops=flops,
                                      transcendentals=transcendentals,
                                      bytes_accessed=bytes_accessed),
    )(*in_arrays)

    # Match PyTorch output shapes: x (B,k,784), mu (B,1,50), log_sigma (B,1,50), eps (B,k,50)
    mu = mls[:, :Z].reshape(B, 1, Z)
    log_sigma = mls[:, ZP:ZP + Z].reshape(B, 1, Z)
    recon = out_pad[:, :D_IN].reshape(B, k, D_IN)
    return recon, mu, log_sigma, eps


def vae_reference(x, eps, params):
    w1, b1, w2, b2, w3m, b3m, w3s, b3s, w4, b4, w5, b5, w6, b6 = params
    B, k, _ = eps.shape
    h = jnp.tanh(x.reshape(B, D_IN) @ w1 + b1)
    h = jnp.tanh(h @ w2 + b2)
    mu = h @ w3m + b3m
    ls = h @ w3s + b3s
    z = mu[:, None, :] + jnp.exp(ls)[:, None, :] * eps
    d = jnp.tanh(jnp.einsum('bkz,zh->bkh', z, w4) + b4)
    d = jnp.tanh(jnp.einsum('bkh,hg->bkg', d, w5) + b5)
    o = jnp.einsum('bkh,hd->bkd', d, w6) + b6
    return o, mu[:, None, :], ls[:, None, :], eps


if __name__ == "__main__":
    key = jax.random.PRNGKey(0)
    k_x, k_eps, k_params = jax.random.split(key, 3)

    B, K = 2, 4                                               # args.k = 4
    x = jax.random.normal(k_x, (B, 1, 28, 28), jnp.float32)   # MNIST-like NCHW input
    # TODO(synk): torch.randn_like(eps) is drawn here with jax.random and passed in.
    eps = jax.random.normal(k_eps, (B, K, Z), jnp.float32)

    params = init_params(k_params)
    kparams = pack_params(params)   # one-time packing, outside the forward path

    out, mu, log_sigma, eps_out = vae_forward(x, eps, kparams)
    jax.block_until_ready(out)
    jax.block_until_ready(mu)
    jax.block_until_ready(log_sigma)

    ref_out, ref_mu, ref_ls, _ = vae_reference(x, eps, params)
    assert out.shape == (B, K, D_IN)
    assert mu.shape == (B, 1, Z) and log_sigma.shape == (B, 1, Z)
    assert eps_out.shape == (B, K, Z)
    assert jnp.allclose(out, ref_out, atol=1e-4, rtol=1e-4)
    assert jnp.allclose(mu, ref_mu, atol=1e-4, rtol=1e-4)
    assert jnp.allclose(log_sigma, ref_ls, atol=1e-4, rtol=1e-4)

    print("KERNEL_OK")
</pallas_src>

<mosaic_0001>
module attributes {stable_mosaic.version = 11 : i64} {
  func.func @vae_kernel(%arg0: memref<2x784xf32, #tpu.memory_space<vmem>>, %arg1: memref<8x50xf32, #tpu.memory_space<vmem>>, %arg2: memref<784x200xf32, #tpu.memory_space<vmem>>, %arg3: memref<200x200xf32, #tpu.memory_space<vmem>>, %arg4: memref<200x256xf32, #tpu.memory_space<vmem>>, %arg5: memref<50x200xf32, #tpu.memory_space<vmem>>, %arg6: memref<8x896xf32, #tpu.memory_space<vmem>>, %arg7: memref<200x200xf32, #tpu.memory_space<any>>, %arg8: memref<200x896xf32, #tpu.memory_space<any>>, %arg9: memref<8x896xf32, #tpu.memory_space<vmem>>, %arg10: memref<2x256xf32, #tpu.memory_space<vmem>>, %arg11: memref<200x200xf32, #tpu.memory_space<vmem>>, %arg12: memref<200x896xf32, #tpu.memory_space<vmem>>, %arg13: memref<2x!tpu.dma_semaphore, #tpu.memory_space<semaphore_mem>>) attributes {dimension_semantics = [], scalar_prefetch = 0 : i64, scratch_operands = 3 : i64, tpu.core_type = #tpu.core_type<tc>} {
    %c0_i32 = arith.constant 0 : i32
    %0 = tpu.memref_slice %arg13[%c0_i32] : memref<2x!tpu.dma_semaphore, #tpu.memory_space<semaphore_mem>> -> memref<1x!tpu.dma_semaphore, #tpu.memory_space<semaphore_mem>>
    %1 = tpu.memref_squeeze %0 : memref<1x!tpu.dma_semaphore, #tpu.memory_space<semaphore_mem>> -> memref<!tpu.dma_semaphore, #tpu.memory_space<semaphore_mem>>
    tpu.enqueue_dma source(%arg7 : memref<200x200xf32, #tpu.memory_space<any>>) target(%arg11 : memref<200x200xf32, #tpu.memory_space<vmem>>) target_semaphore(%1 : memref<!tpu.dma_semaphore, #tpu.memory_space<semaphore_mem>>)
    %c1_i32 = arith.constant 1 : i32
    %2 = tpu.memref_slice %arg13[%c1_i32] : memref<2x!tpu.dma_semaphore, #tpu.memory_space<semaphore_mem>> -> memref<1x!tpu.dma_semaphore, #tpu.memory_space<semaphore_mem>>
    %3 = tpu.memref_squeeze %2 : memref<1x!tpu.dma_semaphore, #tpu.memory_space<semaphore_mem>> -> memref<!tpu.dma_semaphore, #tpu.memory_space<semaphore_mem>>
    tpu.enqueue_dma source(%arg8 : memref<200x896xf32, #tpu.memory_space<any>>) target(%arg12 : memref<200x896xf32, #tpu.memory_space<vmem>>) target_semaphore(%3 : memref<!tpu.dma_semaphore, #tpu.memory_space<semaphore_mem>>)
    %c0 = arith.constant 0 : index
    %c0_0 = arith.constant 0 : index
    %4 = vector.load %arg0[%c0, %c0_0] : memref<2x784xf32, #tpu.memory_space<vmem>>, vector<2x784xf32>
    %c0_1 = arith.constant 0 : index
    %c0_2 = arith.constant 0 : index
    %5 = vector.load %arg2[%c0_1, %c0_2] : memref<784x200xf32, #tpu.memory_space<vmem>>, vector<784x200xf32>
    %cst = arith.constant dense<0.000000e+00> : vector<2x200xf32>
    %6 = tpu.matmul %4, %5, %cst {dimension_numbers = #tpu.dot_dimension_numbers<[1], [0], [0], [1], [0, 0, 1, 1], [], []>} : vector<2x784xf32>, vector<784x200xf32>, vector<2x200xf32> -> vector<2x200xf32>
    %c0_3 = arith.constant 0 : index
    %c0_4 = arith.constant 0 : index
    %7 = vector.load %arg6[%c0_3, %c0_4] : memref<8x896xf32, #tpu.memory_space<vmem>>, vector<1x200xf32>
    %8 = vector.broadcast %7 : vector<1x200xf32> to vector<2x200xf32>
    %9 = arith.addf %6, %8 : vector<2x200xf32>
    %10 = math.tanh %9 : vector<2x200xf32>
    %c0_5 = arith.constant 0 : index
    %c0_6 = arith.constant 0 : index
    %11 = vector.load %arg3[%c0_5, %c0_6] : memref<200x200xf32, #tpu.memory_space<vmem>>, vector<200x200xf32>
    %cst_7 = arith.constant dense<0.000000e+00> : vector<2x200xf32>
    %12 = tpu.matmul %10, %11, %cst_7 {dimension_numbers = #tpu.dot_dimension_numbers<[1], [0], [0], [1], [0, 0, 1, 1], [], []>} : vector<2x200xf32>, vector<200x200xf32>, vector<2x200xf32> -> vector<2x200xf32>
    %c1 = arith.constant 1 : index
    %c0_8 = arith.constant 0 : index
    %13 = vector.load %arg6[%c1, %c0_8] : memref<8x896xf32, #tpu.memory_space<vmem>>, vector<1x200xf32>
    %14 = vector.broadcast %13 : vector<1x200xf32> to vector<2x200xf32>
    %15 = arith.addf %12, %14 : vector<2x200xf32>
    %16 = math.tanh %15 : vector<2x200xf32>
    %c0_9 = arith.constant 0 : index
    %c0_10 = arith.constant 0 : index
    %17 = vector.load %arg4[%c0_9, %c0_10] : memref<200x256xf32, #tpu.memory_space<vmem>>, vector<200x256xf32>
    %cst_11 = arith.constant dense<0.000000e+00> : vector<2x256xf32>
    %18 = tpu.matmul %16, %17, %cst_11 {dimension_numbers = #tpu.dot_dimension_numbers<[1], [0], [0], [1], [0, 0, 1, 1], [], []>} : vector<2x200xf32>, vector<200x256xf32>, vector<2x256xf32> -> vector<2x256xf32>
    %c2 = arith.constant 2 : index
    %c0_12 = arith.constant 0 : index
    %19 = vector.load %arg6[%c2, %c0_12] : memref<8x896xf32, #tpu.memory_space<vmem>>, vector<1x256xf32>
    %20 = vector.broadcast %19 : vector<1x256xf32> to vector<2x256xf32>
    %21 = arith.addf %18, %20 : vector<2x256xf32>
    %c0_13 = arith.constant 0 : index
    %c0_14 = arith.constant 0 : index
    %22 = vector.load %arg10[%c0_13, %c0_14] : memref<2x256xf32, #tpu.memory_space<vmem>>, vector<2x256xf32>
    tpu.vector_store %arg10[%c0_13, %c0_14], %21 {strides = array<i32>} : memref<2x256xf32, #tpu.memory_space<vmem>>, vector<2x256xf32>,
    %23 = vector.extract_strided_slice %21 {offsets = [0, 0], sizes = [2, 50], strides = [1, 1]} : vector<2x256xf32> to vector<2x50xf32>
    %24 = vector.extract_strided_slice %21 {offsets = [0, 128], sizes = [2, 50], strides = [1, 1]} : vector<2x256xf32> to vector<2x50xf32>
    %25 = math.exp %24 : vector<2x50xf32>
    %26 = tpu.iota {dimensions = array<i32: 0>} : vector<8x50xi32>
    %cst_15 = arith.constant 0.000000e+00 : f32
    %27 = vector.broadcast %cst_15 : f32 to vector<8x50xf32>
    %cst_16 = arith.constant 0.000000e+00 : f32
    %28 = vector.broadcast %cst_16 : f32 to vector<8x50xf32>
    %c0_i32_17 = arith.constant 0 : i32
    %29 = vector.broadcast %c0_i32_17 : i32 to vector<8x50xi32>
    %30 = arith.cmpi sge, %26, %29 : vector<8x50xi32>
    %c4_i32 = arith.constant 4 : i32
    %31 = vector.broadcast %c4_i32 : i32 to vector<8x50xi32>
    %32 = arith.cmpi slt, %26, %31 : vector<8x50xi32>
    %33 = arith.andi %30, %32 : vector<8x50xi1>
    %34 = vector.extract_strided_slice %23 {offsets = [0, 0], sizes = [1, 50], strides = [1, 1]} : vector<2x50xf32> to vector<1x50xf32>
    %35 = vector.shape_cast %34 : vector<1x50xf32> to vector<1x50xf32>
    %36 = vector.broadcast %35 : vector<1x50xf32> to vector<8x50xf32>
    %37 = arith.select %33, %36, %27 : vector<8x50xi1>, vector<8x50xf32>
    %38 = vector.extract_strided_slice %25 {offsets = [0, 0], sizes = [1, 50], strides = [1, 1]} : vector<2x50xf32> to vector<1x50xf32>
    %39 = vector.shape_cast %38 : vector<1x50xf32> to vector<1x50xf32>
    %40 = vector.broadcast %39 : vector<1x50xf32> to vector<8x50xf32>
    %41 = arith.select %33, %40, %28 : vector<8x50xi1>, vector<8x50xf32>
    %c4_i32_18 = arith.constant 4 : i32
    %42 = vector.broadcast %c4_i32_18 : i32 to vector<8x50xi32>
    %43 = arith.cmpi sge, %26, %42 : vector<8x50xi32>
    %c8_i32 = arith.constant 8 : i32
    %44 = vector.broadcast %c8_i32 : i32 to vector<8x50xi32>
    %45 = arith.cmpi slt, %26, %44 : vector<8x50xi32>
    %46 = arith.andi %43, %45 : vector<8x50xi1>
    %47 = vector.extract_strided_slice %23 {offsets = [1, 0], sizes = [1, 50], strides = [1, 1]} : vector<2x50xf32> to vector<1x50xf32>
    %48 = vector.shape_cast %47 : vector<1x50xf32> to vector<1x50xf32>
    %49 = vector.broadcast %48 : vector<1x50xf32> to vector<8x50xf32>
    %50 = arith.select %46, %49, %37 : vector<8x50xi1>, vector<8x50xf32>
    %51 = vector.extract_strided_slice %25 {offsets = [1, 0], sizes = [1, 50], strides = [1, 1]} : vector<2x50xf32> to vector<1x50xf32>
    %52 = vector.shape_cast %51 : vector<1x50xf32> to vector<1x50xf32>
    %53 = vector.broadcast %52 : vector<1x50xf32> to vector<8x50xf32>
    %54 = arith.select %46, %53, %41 : vector<8x50xi1>, vector<8x50xf32>
    %c0_19 = arith.constant 0 : index
    %c0_20 = arith.constant 0 : index
    %55 = vector.load %arg1[%c0_19, %c0_20] : memref<8x50xf32, #tpu.memory_space<vmem>>, vector<8x50xf32>
    %56 = arith.mulf %54, %55 : vector<8x50xf32>
    %57 = arith.addf %50, %56 : vector<8x50xf32>
    %c0_21 = arith.constant 0 : index
    %c0_22 = arith.constant 0 : index
    %58 = vector.load %arg5[%c0_21, %c0_22] : memref<50x200xf32, #tpu.memory_space<vmem>>, vector<50x200xf32>
    %cst_23 = arith.constant dense<0.000000e+00> : vector<8x200xf32>
    %59 = tpu.matmul %57, %58, %cst_23 {dimension_numbers = #tpu.dot_dimension_numbers<[1], [0], [0], [1], [0, 0, 1, 1], [], []>} : vector<8x50xf32>, vector<50x200xf32>, vector<8x200xf32> -> vector<8x200xf32>
    %c3 = arith.constant 3 : index
    %c0_24 = arith.constant 0 : index
    %60 = vector.load %arg6[%c3, %c0_24] : memref<8x896xf32, #tpu.memory_space<vmem>>, vector<1x200xf32>
    %61 = vector.broadcast %60 : vector<1x200xf32> to vector<8x200xf32>
    %62 = arith.addf %59, %61 : vector<8x200xf32>
    %63 = math.tanh %62 : vector<8x200xf32>
    %c0_i32_25 = arith.constant 0 : i32
    %64 = tpu.memref_slice %arg13[%c0_i32_25] : memref<2x!tpu.dma_semaphore, #tpu.memory_space<semaphore_mem>> -> memref<1x!tpu.dma_semaphore, #tpu.memory_space<semaphore_mem>>
    %65 = tpu.memref_squeeze %64 : memref<1x!tpu.dma_semaphore, #tpu.memory_space<semaphore_mem>> -> memref<!tpu.dma_semaphore, #tpu.memory_space<semaphore_mem>>
    tpu.wait_dma2 semaphore(%65 : memref<!tpu.dma_semaphore, #tpu.memory_space<semaphore_mem>>) src(%arg7 : memref<200x200xf32, #tpu.memory_space<any>>) dst(%arg11 : memref<200x200xf32, #tpu.memory_space<vmem>>)
    %c0_26 = arith.constant 0 : index
    %c0_27 = arith.constant 0 : index
    %66 = vector.load %arg11[%c0_26, %c0_27] : memref<200x200xf32, #tpu.memory_space<vmem>>, vector<200x200xf32>
    %cst_28 = arith.constant dense<0.000000e+00> : vector<8x200xf32>
    %67 = tpu.matmul %63, %66, %cst_28 {dimension_numbers = #tpu.dot_dimension_numbers<[1], [0], [0], [1], [0, 0, 1, 1], [], []>} : vector<8x200xf32>, vector<200x200xf32>, vector<8x200xf32> -> vector<8x200xf32>
    %c4 = arith.constant 4 : index
    %c0_29 = arith.constant 0 : index
    %68 = vector.load %arg6[%c4, %c0_29] : memref<8x896xf32, #tpu.memory_space<vmem>>, vector<1x200xf32>
    %69 = vector.broadcast %68 : vector<1x200xf32> to vector<8x200xf32>
    %70 = arith.addf %67, %69 : vector<8x200xf32>
    %71 = math.tanh %70 : vector<8x200xf32>
    %c1_i32_30 = arith.constant 1 : i32
    %72 = tpu.memref_slice %arg13[%c1_i32_30] : memref<2x!tpu.dma_semaphore, #tpu.memory_space<semaphore_mem>> -> memref<1x!tpu.dma_semaphore, #tpu.memory_space<semaphore_mem>>
    %73 = tpu.memref_squeeze %72 : memref<1x!tpu.dma_semaphore, #tpu.memory_space<semaphore_mem>> -> memref<!tpu.dma_semaphore, #tpu.memory_space<semaphore_mem>>
    tpu.wait_dma2 semaphore(%73 : memref<!tpu.dma_semaphore, #tpu.memory_space<semaphore_mem>>) src(%arg8 : memref<200x896xf32, #tpu.memory_space<any>>) dst(%arg12 : memref<200x896xf32, #tpu.memory_space<vmem>>)
    %c0_31 = arith.constant 0 : index
    %c0_32 = arith.constant 0 : index
    %74 = vector.load %arg12[%c0_31, %c0_32] : memref<200x896xf32, #tpu.memory_space<vmem>>, vector<200x896xf32>
    %cst_33 = arith.constant dense<0.000000e+00> : vector<8x896xf32>
    %75 = tpu.matmul %71, %74, %cst_33 {dimension_numbers = #tpu.dot_dimension_numbers<[1], [0], [0], [1], [0, 0, 1, 1], [], []>} : vector<8x200xf32>, vector<200x896xf32>, vector<8x896xf32> -> vector<8x896xf32>
    %c5 = arith.constant 5 : index
    %c0_34 = arith.constant 0 : index
    %76 = vector.load %arg6[%c5, %c0_34] : memref<8x896xf32, #tpu.memory_space<vmem>>, vector<1x896xf32>
    %77 = vector.broadcast %76 : vector<1x896xf32> to vector<8x896xf32>
    %78 = arith.addf %75, %77 : vector<8x896xf32>
    %c0_35 = arith.constant 0 : index
    %c0_36 = arith.constant 0 : index
    %79 = vector.load %arg9[%c0_35, %c0_36] : memref<8x896xf32, #tpu.memory_space<vmem>>, vector<8x896xf32>
    tpu.vector_store %arg9[%c0_35, %c0_36], %78 {strides = array<i32>} : memref<8x896xf32, #tpu.memory_space<vmem>>, vector<8x896xf32>,
    return
  }
}

</mosaic_0001>

<llo_original>
// kernel: tpu_custom_call.1
$region0: #{tpu_custom_call.1}
  #allocation0 [shape = 'u32[]', space=smem, size = 0x4, offset = 0x4, fixed_abs, tag = 'smem constant byte address 0x4 - core index']
  #allocation1 [shape = 'u32[144,128]{1,0:T(1,128)}', space=vmem, size = 0x12000, scoped, tag = 'internal scratch']
  #allocation2 [shape = 'f32[200,200]{1,0:T(8,128)}', space=vmem, size = 0x32000, scoped, tag = 'scratch operand']
  #allocation3 [shape = 'f32[200,896]{1,0:T(8,128)}', space=vmem, size = 0xaf000, scoped, tag = 'scratch operand']
  #allocation4 [shape = 's32[2]{0}', space=sflag, size = 0x8, scoped, tag = 'scratch operand']
  #allocation9 [shape = 's32[]', space=sflag, size = 0x4, offset = 0, fixed_abs, tag = 'sflag constant byte address 0x0 - dummy sync flag']
  #allocation10 [shape = 's32[]', space=sflag, size = 0x4, offset = 0, fixed_abs, tag = 'sflag constant byte address 0x0 - dummy sync flag']
  %s0 = inlined_call_operand.vmem [shape: f32[2,784], index: 0, kind: input, shape index: {}]
  %s1 = inlined_call_operand.vmem [shape: f32[8,50], index: 1, kind: input, shape index: {}]
  %s2 = inlined_call_operand.vmem [shape: f32[784,200], index: 2, kind: input, shape index: {}]
  %s3 = inlined_call_operand.vmem [shape: f32[200,200], index: 3, kind: input, shape index: {}]
  %s4 = inlined_call_operand.vmem [shape: f32[200,256], index: 4, kind: input, shape index: {}]
  %s5 = inlined_call_operand.vmem [shape: f32[50,200], index: 5, kind: input, shape index: {}]
  %s6 = inlined_call_operand.vmem [shape: f32[8,896], index: 6, kind: input, shape index: {}]
  %s7 = inlined_call_operand.vmem [shape: f32[200,200], index: 7, kind: input, shape index: {}]
  %s8 = inlined_call_operand.vmem [shape: f32[200,896], index: 8, kind: input, shape index: {}]
  %s9 = inlined_call_operand.hbm [shape: f32[8,896], index: 9, kind: output, shape index: {0}]
  %s10 = inlined_call_operand.hbm [shape: f32[2,256], index: 10, kind: output, shape index: {1}]
  %11 = xla_tuple %s9, %s10
  %s12 = sld [smem:[#allocation0]]
  $region114: #{tpu_custom_call.1} parent=0
    _
  %s14 = ssub.s32 1, %s12
  %s15 = scalar_select 0, %s14, %s12
  $region1: #{tpu_custom_call.1} parent=0
    #allocation5 [shape = 'u8[28672]{0}', space=vmem, size = 0x7000, scoped, tag = 'output window, operand 0, single buffered']
    #allocation6 [shape = 's32[1]{0}', space=sflag, size = 0x4, scoped, tag = 'scoped memory for tpu_custom_call.1']
    #allocation7 [shape = 'u8[2048]{0}', space=vmem, size = 0x800, scoped, tag = 'output window, operand 1, single buffered']
    #allocation8 [shape = 's32[1]{0}', space=sflag, size = 0x4, scoped, tag = 'scoped memory for tpu_custom_call.1']
    %16 = vsyncpa [#allocation6], 0
    %17 = vsyncpa [#allocation8], 0
    // Predicated region
    $region2: #{tpu_custom_call.1} parent=1 // pred_check
      _
    $region3: #{tpu_custom_call.1} parent=1 // pred_check_branch
      %19 = sbr.rel (0) target = $region5
    $region4: #{tpu_custom_call.1} parent=1 // pred_region
      _
    $region5: #{tpu_custom_call.1} parent=1 // pred_fallthru
      _
    // Predicated region
    $region6: #{tpu_custom_call.1} parent=1 // pred_check
      _
    $region7: #{tpu_custom_call.1} parent=1 // pred_check_branch
      %21 = sbr.rel (0) target = $region9
    $region8: #{tpu_custom_call.1} parent=1 // pred_region
      _
    $region9: #{tpu_custom_call.1} parent=1 // pred_fallthru
      _
    // Predicated region
    $region10: #{tpu_custom_call.1} parent=1 // pred_check
      _
    $region11: #{tpu_custom_call.1} parent=1 // pred_check_branch
      %23 = sbr.rel (0) target = $region13
    $region12: #{tpu_custom_call.1} parent=1 // pred_region
      _
    $region13: #{tpu_custom_call.1} parent=1 // pred_fallthru
      _
    // Predicated region
    $region14: #{tpu_custom_call.1} parent=1 // pred_check
      _
    $region15: #{tpu_custom_call.1} parent=1 // pred_check_branch
      %25 = sbr.rel (0) target = $region17
    $region16: #{tpu_custom_call.1} parent=1 // pred_region
      _
    $region17: #{tpu_custom_call.1} parent=1 // pred_fallthru
      _
    // Predicated region
    $region18: #{tpu_custom_call.1} parent=1 // pred_check
      _
    $region19: #{tpu_custom_call.1} parent=1 // pred_check_branch
      %27 = sbr.rel (0) target = $region21
    $region20: #{tpu_custom_call.1} parent=1 // pred_region
      _
    $region21: #{tpu_custom_call.1} parent=1 // pred_fallthru
      _
    // Predicated region
    $region22: #{tpu_custom_call.1} parent=1 // pred_check
      _
    $region23: #{tpu_custom_call.1} parent=1 // pred_check_branch
      %29 = sbr.rel (0) target = $region25
    $region24: #{tpu_custom_call.1} parent=1 // pred_region
      _
    $region25: #{tpu_custom_call.1} parent=1 // pred_fallthru
      _
    // Predicated region
    $region26: #{tpu_custom_call.1} parent=1 // pred_check
      _
    $region27: #{tpu_custom_call.1} parent=1 // pred_check_branch
      %31 = sbr.rel (0) target = $region29
    $region28: #{tpu_custom_call.1} parent=1 // pred_region
      _
    $region29: #{tpu_custom_call.1} parent=1 // pred_fallthru
      _
    %p33 = scmp.lt.u32.totalorder 400, 8
    %p34 = pneg %p33
    // Predicated region
    $region30: #{tpu_custom_call.1} parent=1 // pred_check
      _
    $region31: #{tpu_custom_call.1} parent=1 // pred_check_branch
      %36 = sbr.rel (%p33) target = $region33
    $region32: #{tpu_custom_call.1} parent=1 // pred_region
      %s51 = sand.u32 400, 7
      %p52 = scmp.eq.s32.totalorder %s51, 0
      // Predicated region
      $region45: #{tpu_custom_call.1} parent=32 // pred_check
        %p53 = pneg %p52
      $region46: #{tpu_custom_call.1} parent=32 // pred_check_branch
        %55 = sbr.rel (%p53) target = $region48
      $region47: #{tpu_custom_call.1} parent=32 // pred_region
        loop: start=0, step=1, limit=1
        $region49: #{tpu_custom_call.1} parent=47 // loop_pre_header
          _
        $region50: #{tpu_custom_call.1} parent=47 // loop_header
          %s57 = sphi 0, %s61
          %p58 = scmp.ge.s32.totalorder %s57, 1
          %s62 = sphi %s7, %s7
          %s63 = sphi [#allocation2], [#allocation2]
        $region51: #{tpu_custom_call.1} parent=47 // loop_header_branch
          %60 = sbr.rel (%p58) target = $region55
        $region52: #{tpu_custom_call.1} parent=47 // loop_body
          %v64 = vld [vmem:[%s62] sm:$0xff]
          %65 = vst [vmem:[%s63] sm:$0xff] %v64
          %v66 = vld [vmem:[%s62 + $0x8] sm:$0xff]
          %67 = vst [vmem:[%s63 + $0x8] sm:$0xff] %v66
          %v68 = vld [vmem:[%s62 + $0x10] sm:$0xff]
          %69 = vst [vmem:[%s63 + $0x10] sm:$0xff] %v68
          %v70 = vld [vmem:[%s62 + $0x18] sm:$0xff]
          %71 = vst [vmem:[%s63 + $0x18] sm:$0xff] %v70
          %v72 = vld [vmem:[%s62 + $0x20] sm:$0xff]
          %73 = vst [vmem:[%s63 + $0x20] sm:$0xff] %v72
          %v74 = vld [vmem:[%s62 + $0x28] sm:$0xff]
          %75 = vst [vmem:[%s63 + $0x28] sm:$0xff] %v74
          %v76 = vld [vmem:[%s62 + $0x30] sm:$0xff]
          %77 = vst [vmem:[%s63 + $0x30] sm:$0xff] %v76
          %v78 = vld [vmem:[%s62 + $0x38] sm:$0xff]
          %79 = vst [vmem:[%s63 + $0x38] sm:$0xff] %v78
          %v80 = vld [vmem:[%s62 + $0x40] sm:$0xff]
          %81 = vst [vmem:[%s63 + $0x40] sm:$0xff] %v80
          %v82 = vld [vmem:[%s62 + $0x48] sm:$0xff]
          %83 = vst [vmem:[%s63 + $0x48] sm:$0xff] %v82
          %v84 = vld [vmem:[%s62 + $0x50] sm:$0xff]
          %85 = vst [vmem:[%s63 + $0x50] sm:$0xff] %v84
          %v86 = vld [vmem:[%s62 + $0x58] sm:$0xff]
          %87 = vst [vmem:[%s63 + $0x58] sm:$0xff] %v86
          %v88 = vld [vmem:[%s62 + $0x60] sm:$0xff]
          %89 = vst [vmem:[%s63 + $0x60] sm:$0xff] %v88
          %v90 = vld [vmem:[%s62 + $0x68] sm:$0xff]
          %91 = vst [vmem:[%s63 + $0x68] sm:$0xff] %v90
          %v92 = vld [vmem:[%s62 + $0x70] sm:$0xff]
          %93 = vst [vmem:[%s63 + $0x70] sm:$0xff] %v92
          %v94 = vld [vmem:[%s62 + $0x78] sm:$0xff]
          %95 = vst [vmem:[%s63 + $0x78] sm:$0xff] %v94
          %v96 = vld [vmem:[%s62 + $0x80] sm:$0xff]
          %97 = vst [vmem:[%s63 + $0x80] sm:$0xff] %v96
          %v98 = vld [vmem:[%s62 + $0x88] sm:$0xff]
          %99 = vst [vmem:[%s63 + $0x88] sm:$0xff] %v98
          %v100 = vld [vmem:[%s62 + $0x90] sm:$0xff]
          %101 = vst [vmem:[%s63 + $0x90] sm:$0xff] %v100
          %v102 = vld [vmem:[%s62 + $0x98] sm:$0xff]
          %103 = vst [vmem:[%s63 + $0x98] sm:$0xff] %v102
          %v104 = vld [vmem:[%s62 + $0xa0] sm:$0xff]
          %105 = vst [vmem:[%s63 + $0xa0] sm:$0xff] %v104
          %v106 = vld [vmem:[%s62 + $0xa8] sm:$0xff]
          %107 = vst [vmem:[%s63 + $0xa8] sm:$0xff] %v106
          %v108 = vld [vmem:[%s62 + $0xb0] sm:$0xff]
          %109 = vst [vmem:[%s63 + $0xb0] sm:$0xff] %v108
          %v110 = vld [vmem:[%s62 + $0xb8] sm:$0xff]
          %111 = vst [vmem:[%s63 + $0xb8] sm:$0xff] %v110
          %v112 = vld [vmem:[%s62 + $0xc0] sm:$0xff]
          %113 = vst [vmem:[%s63 + $0xc0] sm:$0xff] %v112
          %v114 = vld [vmem:[%s62 + $0xc8] sm:$0xff]
          %115 = vst [vmem:[%s63 + $0xc8] sm:$0xff] %v114
          %v116 = vld [vmem:[%s62 + $0xd0] sm:$0xff]
          %117 = vst [vmem:[%s63 + $0xd0] sm:$0xff] %v116
          %v118 = vld [vmem:[%s62 + $0xd8] sm:$0xff]
          %119 = vst [vmem:[%s63 + $0xd8] sm:$0xff] %v118
          %v120 = vld [vmem:[%s62 + $0xe0] sm:$0xff]
          %121 = vst [vmem:[%s63 + $0xe0] sm:$0xff] %v120
          %v122 = vld [vmem:[%s62 + $0xe8] sm:$0xff]
          %123 = vst [vmem:[%s63 + $0xe8] sm:$0xff] %v122
          %v124 = vld [vmem:[%s62 + $0xf0] sm:$0xff]
          %125 = vst [vmem:[%s63 + $0xf0] sm:$0xff] %v124
          %v126 = vld [vmem:[%s62 + $0xf8] sm:$0xff]
          %127 = vst [vmem:[%s63 + $0xf8] sm:$0xff] %v126
          %v128 = vld [vmem:[%s62 + $0x100] sm:$0xff]
          %129 = vst [vmem:[%s63 + $0x100] sm:$0xff] %v128
          %v130 = vld [vmem:[%s62 + $0x108] sm:$0xff]
          %131 = vst [vmem:[%s63 + $0x108] sm:$0xff] %v130
          %v132 = vld [vmem:[%s62 + $0x110] sm:$0xff]
          %133 = vst [vmem:[%s63 + $0x110] sm:$0xff] %v132
          %v134 = vld [vmem:[%s62 + $0x118] sm:$0xff]
          %135 = vst [vmem:[%s63 + $0x118] sm:$0xff] %v134
          %v136 = vld [vmem:[%s62 + $0x120] sm:$0xff]
          %137 = vst [vmem:[%s63 + $0x120] sm:$0xff] %v136
          %v138 = vld [vmem:[%s62 + $0x128] sm:$0xff]
          %139 = vst [vmem:[%s63 + $0x128] sm:$0xff] %v138
          %v140 = vld [vmem:[%s62 + $0x130] sm:$0xff]
          %141 = vst [vmem:[%s63 + $0x130] sm:$0xff] %v140
          %v142 = vld [vmem:[%s62 + $0x138] sm:$0xff]
          %143 = vst [vmem:[%s63 + $0x138] sm:$0xff] %v142
          %v144 = vld [vmem:[%s62 + $0x140] sm:$0xff]
          %145 = vst [vmem:[%s63 + $0x140] sm:$0xff] %v144
          %v146 = vld [vmem:[%s62 + $0x148] sm:$0xff]
          %147 = vst [vmem:[%s63 + $0x148] sm:$0xff] %v146
          %v148 = vld [vmem:[%s62 + $0x150] sm:$0xff]
          %149 = vst [vmem:[%s63 + $0x150] sm:$0xff] %v148
          %v150 = vld [vmem:[%s62 + $0x158] sm:$0xff]
          %151 = vst [vmem:[%s63 + $0x158] sm:$0xff] %v150
          %v152 = vld [vmem:[%s62 + $0x160] sm:$0xff]
          %153 = vst [vmem:[%s63 + $0x160] sm:$0xff] %v152
          %v154 = vld [vmem:[%s62 + $0x168] sm:$0xff]
          %155 = vst [vmem:[%s63 + $0x168] sm:$0xff] %v154
          %v156 = vld [vmem:[%s62 + $0x170] sm:$0xff]
          %157 = vst [vmem:[%s63 + $0x170] sm:$0xff] %v156
          %v158 = vld [vmem:[%s62 + $0x178] sm:$0xff]
          %159 = vst [vmem:[%s63 + $0x178] sm:$0xff] %v158
          %v160 = vld [vmem:[%s62 + $0x180] sm:$0xff]
          %161 = vst [vmem:[%s63 + $0x180] sm:$0xff] %v160
          %v162 = vld [vmem:[%s62 + $0x188] sm:$0xff]
          %163 = vst [vmem:[%s63 + $0x188] sm:$0xff] %v162
        $region53: #{tpu_custom_call.1} parent=47 // loop_footer
          %s61 = sadd.s32 1, %s57
        $region54: #{tpu_custom_call.1} parent=47 // loop_footer_branch
          %56 = sbr.rel target = $region50
        $region55: #{tpu_custom_call.1} parent=47 // loop_exit
          _
      $region48: #{tpu_custom_call.1} parent=32 // pred_fallthru
        _
      %p164 = pneg %p52
      // Predicated region
      $region56: #{tpu_custom_call.1} parent=32 // pred_check
        _
      $region57: #{tpu_custom_call.1} parent=32 // pred_check_branch
        %166 = sbr.rel (%p52) target = $region59
      $region58: #{tpu_custom_call.1} parent=32 // pred_region
        %s167 = sand.u32 400, 7
      $region59: #{tpu_custom_call.1} parent=32 // pred_fallthru
        _
    $region33: #{tpu_custom_call.1} parent=1 // pred_fallthru
      _
    // Predicated region
    $region34: #{tpu_custom_call.1} parent=1 // pred_check
      %p37 = pneg %p33
    $region35: #{tpu_custom_call.1} parent=1 // pred_check_branch
      %39 = sbr.rel (%p37) target = $region37
    $region36: #{tpu_custom_call.1} parent=1 // pred_region
      %s40 = sshllo.u32 0, 400
      loop: start=0, step=1, limit=1
      $region38: #{tpu_custom_call.1} parent=36 // loop_pre_header
        _
      $region39: #{tpu_custom_call.1} parent=36 // loop_header
        %s42 = sphi 0, %s46
        %p43 = scmp.ge.s32.totalorder %s42, 1
        %s47 = sphi %s7, %s7
        %s48 = sphi [#allocation2], [#allocation2]
      $region40: #{tpu_custom_call.1} parent=36 // loop_header_branch
        %45 = sbr.rel (%p43) target = $region44
      $region41: #{tpu_custom_call.1} parent=36 // loop_body
        %v49 = vld [vmem:[%s47] sm:%s40]
        %50 = vst [vmem:[%s48] sm:%s40] %v49
      $region42: #{tpu_custom_call.1} parent=36 // loop_footer
        %s46 = sadd.s32 1, %s42
      $region43: #{tpu_custom_call.1} parent=36 // loop_footer_branch
        %41 = sbr.rel target = $region39
      $region44: #{tpu_custom_call.1} parent=36 // loop_exit
        _
    $region37: #{tpu_custom_call.1} parent=1 // pred_fallthru
      _
    // Predicated region
    $region60: #{tpu_custom_call.1} parent=1 // pred_check
      _
    $region61: #{tpu_custom_call.1} parent=1 // pred_check_branch
      %170 = sbr.rel (0) target = $region63
    $region62: #{tpu_custom_call.1} parent=1 // pred_region
      %171 = vsyncadd [#allocation4], 6400
    $region63: #{tpu_custom_call.1} parent=1 // pred_fallthru
      _
    %s172 = scalar_lea.sflag [#allocation4], 1
    %p174 = scmp.lt.u32.totalorder 1400, 8
    %p175 = pneg %p174
    // Predicated region
    $region64: #{tpu_custom_call.1} parent=1 // pred_check
      _
    $region65: #{tpu_custom_call.1} parent=1 // pred_check_branch
      %177 = sbr.rel (%p174) target = $region67
    $region66: #{tpu_custom_call.1} parent=1 // pred_region
      %s192 = sand.u32 1400, 7
      %p193 = scmp.eq.s32.totalorder %s192, 0
      // Predicated region
      $region79: #{tpu_custom_call.1} parent=66 // pred_check
        %p194 = pneg %p193
      $region80: #{tpu_custom_call.1} parent=66 // pred_check_branch
        %196 = sbr.rel (%p194) target = $region82
      $region81: #{tpu_custom_call.1} parent=66 // pred_region
        loop: start=0, step=1, limit=1
        $region83: #{tpu_custom_call.1} parent=81 // loop_pre_header
          _
        $region84: #{tpu_custom_call.1} parent=81 // loop_header
          %s198 = sphi 0, %s202
          %p199 = scmp.ge.s32.totalorder %s198, 1
          %s203 = sphi %s8, %s8
          %s204 = sphi [#allocation3], [#allocation3]
        $region85: #{tpu_custom_call.1} parent=81 // loop_header_branch
          %201 = sbr.rel (%p199) target = $region89
        $region86: #{tpu_custom_call.1} parent=81 // loop_body
          %v205 = vld [vmem:[%s203] sm:$0xff]
          %206 = vst [vmem:[%s204] sm:$0xff] %v205
          %v207 = vld [vmem:[%s203 + $0x8] sm:$0xff]
          %208 = vst [vmem:[%s204 + $0x8] sm:$0xff] %v207
          %v209 = vld [vmem:[%s203 + $0x10] sm:$0xff]
          %210 = vst [vmem:[%s204 + $0x10] sm:$0xff] %v209
          %v211 = vld [vmem:[%s203 + $0x18] sm:$0xff]
          %212 = vst [vmem:[%s204 + $0x18] sm:$0xff] %v211
          %v213 = vld [vmem:[%s203 + $0x20] sm:$0xff]
          %214 = vst [vmem:[%s204 + $0x20] sm:$0xff] %v213
          %v215 = vld [vmem:[%s203 + $0x28] sm:$0xff]
          %216 = vst [vmem:[%s204 + $0x28] sm:$0xff] %v215
          %v217 = vld [vmem:[%s203 + $0x30] sm:$0xff]
          %218 = vst [vmem:[%s204 + $0x30] sm:$0xff] %v217
          %v219 = vld [vmem:[%s203 + $0x38] sm:$0xff]
          %220 = vst [vmem:[%s204 + $0x38] sm:$0xff] %v219
          %v221 = vld [vmem:[%s203 + $0x40] sm:$0xff]
          %222 = vst [vmem:[%s204 + $0x40] sm:$0xff] %v221
          %v223 = vld [vmem:[%s203 + $0x48] sm:$0xff]
          %224 = vst [vmem:[%s204 + $0x48] sm:$0xff] %v223
          %v225 = vld [vmem:[%s203 + $0x50] sm:$0xff]
          %226 = vst [vmem:[%s204 + $0x50] sm:$0xff] %v225
          %v227 = vld [vmem:[%s203 + $0x58] sm:$0xff]
          %228 = vst [vmem:[%s204 + $0x58] sm:$0xff] %v227
          %v229 = vld [vmem:[%s203 + $0x60] sm:$0xff]
          %230 = vst [vmem:[%s204 + $0x60] sm:$0xff] %v229
          %v231 = vld [vmem:[%s203 + $0x68] sm:$0xff]
          %232 = vst [vmem:[%s204 + $0x68] sm:$0xff] %v231
          %v233 = vld [vmem:[%s203 + $0x70] sm:$0xff]
          %234 = vst [vmem:[%s204 + $0x70] sm:$0xff] %v233
          %v235 = vld [vmem:[%s203 + $0x78] sm:$0xff]
          %236 = vst [vmem:[%s204 + $0x78] sm:$0xff] %v235
          %v237 = vld [vmem:[%s203 + $0x80] sm:$0xff]
          %238 = vst [vmem:[%s204 + $0x80] sm:$0xff] %v237
          %v239 = vld [vmem:[%s203 + $0x88] sm:$0xff]
          %240 = vst [vmem:[%s204 + $0x88] sm:$0xff] %v239
          %v241 = vld [vmem:[%s203 + $0x90] sm:$0xff]
          %242 = vst [vmem:[%s204 + $0x90] sm:$0xff] %v241
          %v243 = vld [vmem:[%s203 + $0x98] sm:$0xff]
          %244 = vst [vmem:[%s204 + $0x98] sm:$0xff] %v243
          %v245 = vld [vmem:[%s203 + $0xa0] sm:$0xff]
          %246 = vst [vmem:[%s204 + $0xa0] sm:$0xff] %v245
          %v247 = vld [vmem:[%s203 + $0xa8] sm:$0xff]
          %248 = vst [vmem:[%s204 + $0xa8] sm:$0xff] %v247
          %v249 = vld [vmem:[%s203 + $0xb0] sm:$0xff]
          %250 = vst [vmem:[%s204 + $0xb0] sm:$0xff] %v249
          %v251 = vld [vmem:[%s203 + $0xb8] sm:$0xff]
          %252 = vst [vmem:[%s204 + $0xb8] sm:$0xff] %v251
          %v253 = vld [vmem:[%s203 + $0xc0] sm:$0xff]
          %254 = vst [vmem:[%s204 + $0xc0] sm:$0xff] %v253
          %v255 = vld [vmem:[%s203 + $0xc8] sm:$0xff]
          %256 = vst [vmem:[%s204 + $0xc8] sm:$0xff] %v255
          %v257 = vld [vmem:[%s203 + $0xd0] sm:$0xff]
          %258 = vst [vmem:[%s204 + $0xd0] sm:$0xff] %v257
          %v259 = vld [vmem:[%s203 + $0xd8] sm:$0xff]
          %260 = vst [vmem:[%s204 + $0xd8] sm:$0xff] %v259
          %v261 = vld [vmem:[%s203 + $0xe0] sm:$0xff]
          %262 = vst [vmem:[%s204 + $0xe0] sm:$0xff] %v261
          %v263 = vld [vmem:[%s203 + $0xe8] sm:$0xff]
          %264 = vst [vmem:[%s204 + $0xe8] sm:$0xff] %v263
          %v265 = vld [vmem:[%s203 + $0xf0] sm:$0xff]
          %266 = vst [vmem:[%s204 + $0xf0] sm:$0xff] %v265
          %v267 = vld [vmem:[%s203 + $0xf8] sm:$0xff]
          %268 = vst [vmem:[%s204 + $0xf8] sm:$0xff] %v267
          %v269 = vld [vmem:[%s203 + $0x100] sm:$0xff]
          %270 = vst [vmem:[%s204 + $0x100] sm:$0xff] %v269
          %v271 = vld [vmem:[%s203 + $0x108] sm:$0xff]
          %272 = vst [vmem:[%s204 + $0x108] sm:$0xff] %v271
          %v273 = vld [vmem:[%s203 + $0x110] sm:$0xff]
          %274 = vst [vmem:[%s204 + $0x110] sm:$0xff] %v273
          %v275 = vld [vmem:[%s203 + $0x118] sm:$0xff]
          %276 = vst [vmem:[%s204 + $0x118] sm:$0xff] %v275
          %v277 = vld [vmem:[%s203 + $0x120] sm:$0xff]
          %278 = vst [vmem:[%s204 + $0x120] sm:$0xff] %v277
          %v279 = vld [vmem:[%s203 + $0x128] sm:$0xff]
          %280 = vst [vmem:[%s204 + $0x128] sm:$0xff] %v279
          %v281 = vld [vmem:[%s203 + $0x130] sm:$0xff]
          %282 = vst [vmem:[%s204 + $0x130] sm:$0xff] %v281
          %v283 = vld [vmem:[%s203 + $0x138] sm:$0xff]
          %284 = vst [vmem:[%s204 + $0x138] sm:$0xff] %v283
          %v285 = vld [vmem:[%s203 + $0x140] sm:$0xff]
          %286 = vst [vmem:[%s204 + $0x140] sm:$0xff] %v285
          %v287 = vld [vmem:[%s203 + $0x148] sm:$0xff]
          %288 = vst [vmem:[%s204 + $0x148] sm:$0xff] %v287
          %v289 = vld [vmem:[%s203 + $0x150] sm:$0xff]
          %290 = vst [vmem:[%s204 + $0x150] sm:$0xff] %v289
          %v291 = vld [vmem:[%s203 + $0x158] sm:$0xff]
          %292 = vst [vmem:[%s204 + $0x158] sm:$0xff] %v291
          %v293 = vld [vmem:[%s203 + $0x160] sm:$0xff]
          %294 = vst [vmem:[%s204 + $0x160] sm:$0xff] %v293
          %v295 = vld [vmem:[%s203 + $0x168] sm:$0xff]
          %296 = vst [vmem:[%s204 + $0x168] sm:$0xff] %v295
          %v297 = vld [vmem:[%s203 + $0x170] sm:$0xff]
          %298 = vst [vmem:[%s204 + $0x170] sm:$0xff] %v297
          %v299 = vld [vmem:[%s203 + $0x178] sm:$0xff]
          %300 = vst [vmem:[%s204 + $0x178] sm:$0xff] %v299
          %v301 = vld [vmem:[%s203 + $0x180] sm:$0xff]
          %302 = vst [vmem:[%s204 + $0x180] sm:$0xff] %v301
          %v303 = vld [vmem:[%s203 + $0x188] sm:$0xff]
          %304 = vst [vmem:[%s204 + $0x188] sm:$0xff] %v303
          %v305 = vld [vmem:[%s203 + $0x190] sm:$0xff]
          %306 = vst [vmem:[%s204 + $0x190] sm:$0xff] %v305
          %v307 = vld [vmem:[%s203 + $0x198] sm:$0xff]
          %308 = vst [vmem:[%s204 + $0x198] sm:$0xff] %v307
          %v309 = vld [vmem:[%s203 + $0x1a0] sm:$0xff]
          %310 = vst [vmem:[%s204 + $0x1a0] sm:$0xff] %v309
          %v311 = vld [vmem:[%s203 + $0x1a8] sm:$0xff]
          %312 = vst [vmem:[%s204 + $0x1a8] sm:$0xff] %v311
          %v313 = vld [vmem:[%s203 + $0x1b0] sm:$0xff]
          %314 = vst [vmem:[%s204 + $0x1b0] sm:$0xff] %v313
          %v315 = vld [vmem:[%s203 + $0x1b8] sm:$0xff]
          %316 = vst [vmem:[%s204 + $0x1b8] sm:$0xff] %v315
          %v317 = vld [vmem:[%s203 + $0x1c0] sm:$0xff]
          %318 = vst [vmem:[%s204 + $0x1c0] sm:$0xff] %v317
          %v319 = vld [vmem:[%s203 + $0x1c8] sm:$0xff]
          %320 = vst [vmem:[%s204 + $0x1c8] sm:$0xff] %v319
          %v321 = vld [vmem:[%s203 + $0x1d0] sm:$0xff]
          %322 = vst [vmem:[%s204 + $0x1d0] sm:$0xff] %v321
          %v323 = vld [vmem:[%s203 + $0x1d8] sm:$0xff]
          %324 = vst [vmem:[%s204 + $0x1d8] sm:$0xff] %v323
          %v325 = vld [vmem:[%s203 + $0x1e0] sm:$0xff]
          %326 = vst [vmem:[%s204 + $0x1e0] sm:$0xff] %v325
          %v327 = vld [vmem:[%s203 + $0x1e8] sm:$0xff]
          %328 = vst [vmem:[%s204 + $0x1e8] sm:$0xff] %v327
          %v329 = vld [vmem:[%s203 + $0x1f0] sm:$0xff]
          %330 = vst [vmem:[%s204 + $0x1f0] sm:$0xff] %v329
          %v331 = vld [vmem:[%s203 + $0x1f8] sm:$0xff]
          %332 = vst [vmem:[%s204 + $0x1f8] sm:$0xff] %v331
          %v333 = vld [vmem:[%s203 + $0x200] sm:$0xff]
          %334 = vst [vmem:[%s204 + $0x200] sm:$0xff] %v333
          %v335 = vld [vmem:[%s203 + $0x208] sm:$0xff]
          %336 = vst [vmem:[%s204 + $0x208] sm:$0xff] %v335
          %v337 = vld [vmem:[%s203 + $0x210] sm:$0xff]
          %338 = vst [vmem:[%s204 + $0x210] sm:$0xff] %v337
          %v339 = vld [vmem:[%s203 + $0x218] sm:$0xff]
          %340 = vst [vmem:[%s204 + $0x218] sm:$0xff] %v339
          %v341 = vld [vmem:[%s203 + $0x220] sm:$0xff]
          %342 = vst [vmem:[%s204 + $0x220] sm:$0xff] %v341
          %v343 = vld [vmem:[%s203 + $0x228] sm:$0xff]
          %344 = vst [vmem:[%s204 + $0x228] sm:$0xff] %v343
          %v345 = vld [vmem:[%s203 + $0x230] sm:$0xff]
          %346 = vst [vmem:[%s204 + $0x230] sm:$0xff] %v345
          %v347 = vld [vmem:[%s203 + $0x238] sm:$0xff]
          %348 = vst [vmem:[%s204 + $0x238] sm:$0xff] %v347
          %v349 = vld [vmem:[%s203 + $0x240] sm:$0xff]
          %350 = vst [vmem:[%s204 + $0x240] sm:$0xff] %v349
          %v351 = vld [vmem:[%s203 + $0x248] sm:$0xff]
          %352 = vst [vmem:[%s204 + $0x248] sm:$0xff] %v351
          %v353 = vld [vmem:[%s203 + $0x250] sm:$0xff]
          %354 = vst [vmem:[%s204 + $0x250] sm:$0xff] %v353
          %v355 = vld [vmem:[%s203 + $0x258] sm:$0xff]
          %356 = vst [vmem:[%s204 + $0x258] sm:$0xff] %v355
          %v357 = vld [vmem:[%s203 + $0x260] sm:$0xff]
          %358 = vst [vmem:[%s204 + $0x260] sm:$0xff] %v357
          %v359 = vld [vmem:[%s203 + $0x268] sm:$0xff]
          %360 = vst [vmem:[%s204 + $0x268] sm:$0xff] %v359
          %v361 = vld [vmem:[%s203 + $0x270] sm:$0xff]
          %362 = vst [vmem:[%s204 + $0x270] sm:$0xff] %v361
          %v363 = vld [vmem:[%s203 + $0x278] sm:$0xff]
          %364 = vst [vmem:[%s204 + $0x278] sm:$0xff] %v363
          %v365 = vld [vmem:[%s203 + $0x280] sm:$0xff]
          %366 = vst [vmem:[%s204 + $0x280] sm:$0xff] %v365
          %v367 = vld [vmem:[%s203 + $0x288] sm:$0xff]
          %368 = vst [vmem:[%s204 + $0x288] sm:$0xff] %v367
          %v369 = vld [vmem:[%s203 + $0x290] sm:$0xff]
          %370 = vst [vmem:[%s204 + $0x290] sm:$0xff] %v369
          %v371 = vld [vmem:[%s203 + $0x298] sm:$0xff]
          %372 = vst [vmem:[%s204 + $0x298] sm:$0xff] %v371
          %v373 = vld [vmem:[%s203 + $0x2a0] sm:$0xff]
          %374 = vst [vmem:[%s204 + $0x2a0] sm:$0xff] %v373
          %v375 = vld [vmem:[%s203 + $0x2a8] sm:$0xff]
          %376 = vst [vmem:[%s204 + $0x2a8] sm:$0xff] %v375
          %v377 = vld [vmem:[%s203 + $0x2b0] sm:$0xff]
          %378 = vst [vmem:[%s204 + $0x2b0] sm:$0xff] %v377
          %v379 = vld [vmem:[%s203 + $0x2b8] sm:$0xff]
          %380 = vst [vmem:[%s204 + $0x2b8] sm:$0xff] %v379
          %v381 = vld [vmem:[%s203 + $0x2c0] sm:$0xff]
          %382 = vst [vmem:[%s204 + $0x2c0] sm:$0xff] %v381
          %v383 = vld [vmem:[%s203 + $0x2c8] sm:$0xff]
          %384 = vst [vmem:[%s204 + $0x2c8] sm:$0xff] %v383
          %v385 = vld [vmem:[%s203 + $0x2d0] sm:$0xff]
          %386 = vst [vmem:[%s204 + $0x2d0] sm:$0xff] %v385
          %v387 = vld [vmem:[%s203 + $0x2d8] sm:$0xff]
          %388 = vst [vmem:[%s204 + $0x2d8] sm:$0xff] %v387
          %v389 = vld [vmem:[%s203 + $0x2e0] sm:$0xff]
          %390 = vst [vmem:[%s204 + $0x2e0] sm:$0xff] %v389
          %v391 = vld [vmem:[%s203 + $0x2e8] sm:$0xff]
          %392 = vst [vmem:[%s204 + $0x2e8] sm:$0xff] %v391
          %v393 = vld [vmem:[%s203 + $0x2f0] sm:$0xff]
          %394 = vst [vmem:[%s204 + $0x2f0] sm:$0xff] %v393
          %v395 = vld [vmem:[%s203 + $0x2f8] sm:$0xff]
          %396 = vst [vmem:[%s204 + $0x2f8] sm:$0xff] %v395
          %v397 = vld [vmem:[%s203 + $0x300] sm:$0xff]
          %398 = vst [vmem:[%s204 + $0x300] sm:$0xff] %v397
          %v399 = vld [vmem:[%s203 + $0x308] sm:$0xff]
          %400 = vst [vmem:[%s204 + $0x308] sm:$0xff] %v399
          %v401 = vld [vmem:[%s203 + $0x310] sm:$0xff]
          %402 = vst [vmem:[%s204 + $0x310] sm:$0xff] %v401
          %v403 = vld [vmem:[%s203 + $0x318] sm:$0xff]
          %404 = vst [vmem:[%s204 + $0x318] sm:$0xff] %v403
          %v405 = vld [vmem:[%s203 + $0x320] sm:$0xff]
          %406 = vst [vmem:[%s204 + $0x320] sm:$0xff] %v405
          %v407 = vld [vmem:[%s203 + $0x328] sm:$0xff]
          %408 = vst [vmem:[%s204 + $0x328] sm:$0xff] %v407
          %v409 = vld [vmem:[%s203 + $0x330] sm:$0xff]
          %410 = vst [vmem:[%s204 + $0x330] sm:$0xff] %v409
          %v411 = vld [vmem:[%s203 + $0x338] sm:$0xff]
          %412 = vst [vmem:[%s204 + $0x338] sm:$0xff] %v411
          %v413 = vld [vmem:[%s203 + $0x340] sm:$0xff]
          %414 = vst [vmem:[%s204 + $0x340] sm:$0xff] %v413
          %v415 = vld [vmem:[%s203 + $0x348] sm:$0xff]
          %416 = vst [vmem:[%s204 + $0x348] sm:$0xff] %v415
          %v417 = vld [vmem:[%s203 + $0x350] sm:$0xff]
          %418 = vst [vmem:[%s204 + $0x350] sm:$0xff] %v417
          %v419 = vld [vmem:[%s203 + $0x358] sm:$0xff]
          %420 = vst [vmem:[%s204 + $0x358] sm:$0xff] %v419
          %v421 = vld [vmem:[%s203 + $0x360] sm:$0xff]
          %422 = vst [vmem:[%s204 + $0x360] sm:$0xff] %v421
          %v423 = vld [vmem:[%s203 + $0x368] sm:$0xff]
          %424 = vst [vmem:[%s204 + $0x368] sm:$0xff] %v423
          %v425 = vld [vmem:[%s203 + $0x370] sm:$0xff]
          %426 = vst [vmem:[%s204 + $0x370] sm:$0xff] %v425
          %v427 = vld [vmem:[%s203 + $0x378] sm:$0xff]
          %428 = vst [vmem:[%s204 + $0x378] sm:$0xff] %v427
          %v429 = vld [vmem:[%s203 + $0x380] sm:$0xff]
          %430 = vst [vmem:[%s204 + $0x380] sm:$0xff] %v429
          %v431 = vld [vmem:[%s203 + $0x388] sm:$0xff]
          %432 = vst [vmem:[%s204 + $0x388] sm:$0xff] %v431
          %v433 = vld [vmem:[%s203 + $0x390] sm:$0xff]
          %434 = vst [vmem:[%s204 + $0x390] sm:$0xff] %v433
          %v435 = vld [vmem:[%s203 + $0x398] sm:$0xff]
          %436 = vst [vmem:[%s204 + $0x398] sm:$0xff] %v435
          %v437 = vld [vmem:[%s203 + $0x3a0] sm:$0xff]
          %438 = vst [vmem:[%s204 + $0x3a0] sm:$0xff] %v437
          %v439 = vld [vmem:[%s203 + $0x3a8] sm:$0xff]
          %440 = vst [vmem:[%s204 + $0x3a8] sm:$0xff] %v439
          %v441 = vld [vmem:[%s203 + $0x3b0] sm:$0xff]
          %442 = vst [vmem:[%s204 + $0x3b0] sm:$0xff] %v441
          %v443 = vld [vmem:[%s203 + $0x3b8] sm:$0xff]
          %444 = vst [vmem:[%s204 + $0x3b8] sm:$0xff] %v443
          %v445 = vld [vmem:[%s203 + $0x3c0] sm:$0xff]
          %446 = vst [vmem:[%s204 + $0x3c0] sm:$0xff] %v445
          %v447 = vld [vmem:[%s203 + $0x3c8] sm:$0xff]
          %448 = vst [vmem:[%s204 + $0x3c8] sm:$0xff] %v447
          %v449 = vld [vmem:[%s203 + $0x3d0] sm:$0xff]
          %450 = vst [vmem:[%s204 + $0x3d0] sm:$0xff] %v449
          %v451 = vld [vmem:[%s203 + $0x3d8] sm:$0xff]
          %452 = vst [vmem:[%s204 + $0x3d8] sm:$0xff] %v451
          %v453 = vld [vmem:[%s203 + $0x3e0] sm:$0xff]
          %454 = vst [vmem:[%s204 + $0x3e0] sm:$0xff] %v453
          %v455 = vld [vmem:[%s203 + $0x3e8] sm:$0xff]
          %456 = vst [vmem:[%s204 + $0x3e8] sm:$0xff] %v455
          %v457 = vld [vmem:[%s203 + $0x3f0] sm:$0xff]
          %458 = vst [vmem:[%s204 + $0x3f0] sm:$0xff] %v457
          %v459 = vld [vmem:[%s203 + $0x3f8] sm:$0xff]
          %460 = vst [vmem:[%s204 + $0x3f8] sm:$0xff] %v459
          %v461 = vld [vmem:[%s203 + $0x400] sm:$0xff]
          %462 = vst [vmem:[%s204 + $0x400] sm:$0xff] %v461
          %v463 = vld [vmem:[%s203 + $0x408] sm:$0xff]
          %464 = vst [vmem:[%s204 + $0x408] sm:$0xff] %v463
          %v465 = vld [vmem:[%s203 + $0x410] sm:$0xff]
          %466 = vst [vmem:[%s204 + $0x410] sm:$0xff] %v465
          %v467 = vld [vmem:[%s203 + $0x418] sm:$0xff]
          %468 = vst [vmem:[%s204 + $0x418] sm:$0xff] %v467
          %v469 = vld [vmem:[%s203 + $0x420] sm:$0xff]
          %470 = vst [vmem:[%s204 + $0x420] sm:$0xff] %v469
          %v471 = vld [vmem:[%s203 + $0x428] sm:$0xff]
          %472 = vst [vmem:[%s204 + $0x428] sm:$0xff] %v471
          %v473 = vld [vmem:[%s203 + $0x430] sm:$0xff]
          %474 = vst [vmem:[%s204 + $0x430] sm:$0xff] %v473
          %v475 = vld [vmem:[%s203 + $0x438] sm:$0xff]
          %476 = vst [vmem:[%s204 + $0x438] sm:$0xff] %v475
          %v477 = vld [vmem:[%s203 + $0x440] sm:$0xff]
          %478 = vst [vmem:[%s204 + $0x440] sm:$0xff] %v477
          %v479 = vld [vmem:[%s203 + $0x448] sm:$0xff]
          %480 = vst [vmem:[%s204 + $0x448] sm:$0xff] %v479
          %v481 = vld [vmem:[%s203 + $0x450] sm:$0xff]
          %482 = vst [vmem:[%s204 + $0x450] sm:$0xff] %v481
          %v483 = vld [vmem:[%s203 + $0x458] sm:$0xff]
          %484 = vst [vmem:[%s204 + $0x458] sm:$0xff] %v483
          %v485 = vld [vmem:[%s203 + $0x460] sm:$0xff]
          %486 = vst [vmem:[%s204 + $0x460] sm:$0xff] %v485
          %v487 = vld [vmem:[%s203 + $0x468] sm:$0xff]
          %488 = vst [vmem:[%s204 + $0x468] sm:$0xff] %v487
          %v489 = vld [vmem:[%s203 + $0x470] sm:$0xff]
          %490 = vst [vmem:[%s204 + $0x470] sm:$0xff] %v489
          %v491 = vld [vmem:[%s203 + $0x478] sm:$0xff]
          %492 = vst [vmem:[%s204 + $0x478] sm:$0xff] %v491
          %v493 = vld [vmem:[%s203 + $0x480] sm:$0xff]
          %494 = vst [vmem:[%s204 + $0x480] sm:$0xff] %v493
          %v495 = vld [vmem:[%s203 + $0x488] sm:$0xff]
          %496 = vst [vmem:[%s204 + $0x488] sm:$0xff] %v495
          %v497 = vld [vmem:[%s203 + $0x490] sm:$0xff]
          %498 = vst [vmem:[%s204 + $0x490] sm:$0xff] %v497
          %v499 = vld [vmem:[%s203 + $0x498] sm:$0xff]
          %500 = vst [vmem:[%s204 + $0x498] sm:$0xff] %v499
          %v501 = vld [vmem:[%s203 + $0x4a0] sm:$0xff]
          %502 = vst [vmem:[%s204 + $0x4a0] sm:$0xff] %v501
          %v503 = vld [vmem:[%s203 + $0x4a8] sm:$0xff]
          %504 = vst [vmem:[%s204 + $0x4a8] sm:$0xff] %v503
          %v505 = vld [vmem:[%s203 + $0x4b0] sm:$0xff]
          %506 = vst [vmem:[%s204 + $0x4b0] sm:$0xff] %v505
          %v507 = vld [vmem:[%s203 + $0x4b8] sm:$0xff]
          %508 = vst [vmem:[%s204 + $0x4b8] sm:$0xff] %v507
          %v509 = vld [vmem:[%s203 + $0x4c0] sm:$0xff]
          %510 = vst [vmem:[%s204 + $0x4c0] sm:$0xff] %v509
          %v511 = vld [vmem:[%s203 + $0x4c8] sm:$0xff]
          %512 = vst [vmem:[%s204 + $0x4c8] sm:$0xff] %v511
          %v513 = vld [vmem:[%s203 + $0x4d0] sm:$0xff]
          %514 = vst [vmem:[%s204 + $0x4d0] sm:$0xff] %v513
          %v515 = vld [vmem:[%s203 + $0x4d8] sm:$0xff]
          %516 = vst [vmem:[%s204 + $0x4d8] sm:$0xff] %v515
          %v517 = vld [vmem:[%s203 + $0x4e0] sm:$0xff]
          %518 = vst [vmem:[%s204 + $0x4e0] sm:$0xff] %v517
          %v519 = vld [vmem:[%s203 + $0x4e8] sm:$0xff]
          %520 = vst [vmem:[%s204 + $0x4e8] sm:$0xff] %v519
          %v521 = vld [vmem:[%s203 + $0x4f0] sm:$0xff]
          %522 = vst [vmem:[%s204 + $0x4f0] sm:$0xff] %v521
          %v523 = vld [vmem:[%s203 + $0x4f8] sm:$0xff]
          %524 = vst [vmem:[%s204 + $0x4f8] sm:$0xff] %v523
          %v525 = vld [vmem:[%s203 + $0x500] sm:$0xff]
          %526 = vst [vmem:[%s204 + $0x500] sm:$0xff] %v525
          %v527 = vld [vmem:[%s203 + $0x508] sm:$0xff]
          %528 = vst [vmem:[%s204 + $0x508] sm:$0xff] %v527
          %v529 = vld [vmem:[%s203 + $0x510] sm:$0xff]
          %530 = vst [vmem:[%s204 + $0x510] sm:$0xff] %v529
          %v531 = vld [vmem:[%s203 + $0x518] sm:$0xff]
          %532 = vst [vmem:[%s204 + $0x518] sm:$0xff] %v531
          %v533 = vld [vmem:[%s203 + $0x520] sm:$0xff]
          %534 = vst [vmem:[%s204 + $0x520] sm:$0xff] %v533
          %v535 = vld [vmem:[%s203 + $0x528] sm:$0xff]
          %536 = vst [vmem:[%s204 + $0x528] sm:$0xff] %v535
          %v537 = vld [vmem:[%s203 + $0x530] sm:$0xff]
          %538 = vst [vmem:[%s204 + $0x530] sm:$0xff] %v537
          %v539 = vld [vmem:[%s203 + $0x538] sm:$0xff]
          %540 = vst [vmem:[%s204 + $0x538] sm:$0xff] %v539
          %v541 = vld [vmem:[%s203 + $0x540] sm:$0xff]
          %542 = vst [vmem:[%s204 + $0x540] sm:$0xff] %v541
          %v543 = vld [vmem:[%s203 + $0x548] sm:$0xff]
          %544 = vst [vmem:[%s204 + $0x548] sm:$0xff] %v543
          %v545 = vld [vmem:[%s203 + $0x550] sm:$0xff]
          %546 = vst [vmem:[%s204 + $0x550] sm:$0xff] %v545
          %v547 = vld [vmem:[%s203 + $0x558] sm:$0xff]
          %548 = vst [vmem:[%s204 + $0x558] sm:$0xff] %v547
          %v549 = vld [vmem:[%s203 + $0x560] sm:$0xff]
          %550 = vst [vmem:[%s204 + $0x560] sm:$0xff] %v549
          %v551 = vld [vmem:[%s203 + $0x568] sm:$0xff]
          %552 = vst [vmem:[%s204 + $0x568] sm:$0xff] %v551
          %v553 = vld [vmem:[%s203 + $0x570] sm:$0xff]
          %554 = vst [vmem:[%s204 + $0x570] sm:$0xff] %v553
        $region87: #{tpu_custom_call.1} parent=81 // loop_footer
          %s202 = sadd.s32 1, %s198
        $region88: #{tpu_custom_call.1} parent=81 // loop_footer_branch
          %197 = sbr.rel target = $region84
        $region89: #{tpu_custom_call.1} parent=81 // loop_exit
          _
      $region82: #{tpu_custom_call.1} parent=66 // pred_fallthru
        _
      %p555 = pneg %p193
      // Predicated region
      $region90: #{tpu_custom_call.1} parent=66 // pred_check
        _
      $region91: #{tpu_custom_call.1} parent=66 // pred_check_branch
        %557 = sbr.rel (%p193) target = $region93
      $region92: #{tpu_custom_call.1} parent=66 // pred_region
        %s558 = sand.u32 1400, 7
      $region93: #{tpu_custom_call.1} parent=66 // pred_fallthru
        _
    $region67: #{tpu_custom_call.1} parent=1 // pred_fallthru
      _
    // Predicated region
    $region68: #{tpu_custom_call.1} parent=1 // pred_check
      %p178 = pneg %p174
    $region69: #{tpu_custom_call.1} parent=1 // pred_check_branch
      %180 = sbr.rel (%p178) target = $region71
    $region70: #{tpu_custom_call.1} parent=1 // pred_region
      %s181 = sshllo.u32 0, 1400
      loop: start=0, step=1, limit=1
      $region72: #{tpu_custom_call.1} parent=70 // loop_pre_header
        _
      $region73: #{tpu_custom_call.1} parent=70 // loop_header
        %s183 = sphi 0, %s187
        %p184 = scmp.ge.s32.totalorder %s183, 1
        %s188 = sphi %s8, %s8
        %s189 = sphi [#allocation3], [#allocation3]
      $region74: #{tpu_custom_call.1} parent=70 // loop_header_branch
        %186 = sbr.rel (%p184) target = $region78
      $region75: #{tpu_custom_call.1} parent=70 // loop_body
        %v190 = vld [vmem:[%s188] sm:%s181]
        %191 = vst [vmem:[%s189] sm:%s181] %v190
      $region76: #{tpu_custom_call.1} parent=70 // loop_footer
        %s187 = sadd.s32 1, %s183
      $region77: #{tpu_custom_call.1} parent=70 // loop_footer_branch
        %182 = sbr.rel target = $region73
      $region78: #{tpu_custom_call.1} parent=70 // loop_exit
        _
    $region71: #{tpu_custom_call.1} parent=1 // pred_fallthru
      _
    // Predicated region
    $region94: #{tpu_custom_call.1} parent=1 // pred_check
      _
    $region95: #{tpu_custom_call.1} parent=1 // pred_check_branch
      %561 = sbr.rel (0) target = $region97
    $region96: #{tpu_custom_call.1} parent=1 // pred_region
      %562 = vsyncadd %s172, 22400
    $region97: #{tpu_custom_call.1} parent=1 // pred_fallthru
      _
    %v563 = vld [vmem:[%s0] sm:$0xff]
    %v564 = vld [vmem:[%s0 + $0x8] sm:$0x3f]
    %v565 = vld [vmem:[%s2] sm:$0xff]
    %v566 = vld [vmem:[%s2 + $0x8] sm:$0xff]
    %v567 = vld [vmem:[%s2 + $0x10] sm:$0xff]
    %v568 = vld [vmem:[%s2 + $0x18] sm:$0xff]
    %v569 = vld [vmem:[%s2 + $0x20] sm:$0xff]
    %v570 = vld [vmem:[%s2 + $0x28] sm:$0xff]
    %v571 = vld [vmem:[%s2 + $0x30] sm:$0xff]
    %v572 = vld [vmem:[%s2 + $0x38] sm:$0xff]
    %v573 = vld [vmem:[%s2 + $0x40] sm:$0xff]
    %v574 = vld [vmem:[%s2 + $0x48] sm:$0xff]
    %v575 = vld [vmem:[%s2 + $0x50] sm:$0xff]
    %v576 = vld [vmem:[%s2 + $0x58] sm:$0xff]
    %v577 = vld [vmem:[%s2 + $0x60] sm:$0xff]
    %v578 = vld [vmem:[%s2 + $0x68] sm:$0xff]
    %v579 = vld [vmem:[%s2 + $0x70] sm:$0xff]
    %v580 = vld [vmem:[%s2 + $0x78] sm:$0xff]
    %v581 = vld [vmem:[%s2 + $0x80] sm:$0xff]
    %v582 = vld [vmem:[%s2 + $0x88] sm:$0xff]
    %v583 = vld [vmem:[%s2 + $0x90] sm:$0xff]
    %v584 = vld [vmem:[%s2 + $0x98] sm:$0xff]
    %v585 = vld [vmem:[%s2 + $0xa0] sm:$0xff]
    %v586 = vld [vmem:[%s2 + $0xa8] sm:$0xff]
    %v587 = vld [vmem:[%s2 + $0xb0] sm:$0xff]
    %v588 = vld [vmem:[%s2 + $0xb8] sm:$0xff]
    %v589 = vld [vmem:[%s2 + $0xc0] sm:$0xff]
    %v590 = vld [vmem:[%s2 + $0xc8] sm:$0xff]
    %v591 = vld [vmem:[%s2 + $0xd0] sm:$0xff]
    %v592 = vld [vmem:[%s2 + $0xd8] sm:$0xff]
    %v593 = vld [vmem:[%s2 + $0xe0] sm:$0xff]
    %v594 = vld [vmem:[%s2 + $0xe8] sm:$0xff]
    %v595 = vld [vmem:[%s2 + $0xf0] sm:$0xff]
    %v596 = vld [vmem:[%s2 + $0xf8] sm:$0xff]
    %v597 = vld [vmem:[%s2 + $0x100] sm:$0xff]
    %v598 = vld [vmem:[%s2 + $0x108] sm:$0xff]
    %v599 = vld [vmem:[%s2 + $0x110] sm:$0xff]
    %v600 = vld [vmem:[%s2 + $0x118] sm:$0xff]
    %v601 = vld [vmem:[%s2 + $0x120] sm:$0xff]
    %v602 = vld [vmem:[%s2 + $0x128] sm:$0xff]
    %v603 = vld [vmem:[%s2 + $0x130] sm:$0xff]
    %v604 = vld [vmem:[%s2 + $0x138] sm:$0xff]
    %v605 = vld [vmem:[%s2 + $0x140] sm:$0xff]
    %v606 = vld [vmem:[%s2 + $0x148] sm:$0xff]
    %v607 = vld [vmem:[%s2 + $0x150] sm:$0xff]
    %v608 = vld [vmem:[%s2 + $0x158] sm:$0xff]
    %v609 = vld [vmem:[%s2 + $0x160] sm:$0xff]
    %v610 = vld [vmem:[%s2 + $0x168] sm:$0xff]
    %v611 = vld [vmem:[%s2 + $0x170] sm:$0xff]
    %v612 = vld [vmem:[%s2 + $0x178] sm:$0xff]
    %v613 = vld [vmem:[%s2 + $0x180] sm:$0xff]
    %v614 = vld [vmem:[%s2 + $0x188] sm:$0xff]
    %v615 = vld [vmem:[%s2 + $0x190] sm:$0xff]
    %v616 = vld [vmem:[%s2 + $0x198] sm:$0xff]
    %v617 = vld [vmem:[%s2 + $0x1a0] sm:$0xff]
    %v618 = vld [vmem:[%s2 + $0x1a8] sm:$0xff]
    %v619 = vld [vmem:[%s2 + $0x1b0] sm:$0xff]
    %v620 = vld [vmem:[%s2 + $0x1b8] sm:$0xff]
    %v621 = vld [vmem:[%s2 + $0x1c0] sm:$0xff]
    %v622 = vld [vmem:[%s2 + $0x1c8] sm:$0xff]
    %v623 = vld [vmem:[%s2 + $0x1d0] sm:$0xff]
    %v624 = vld [vmem:[%s2 + $0x1d8] sm:$0xff]
    %v625 = vld [vmem:[%s2 + $0x1e0] sm:$0xff]
    %v626 = vld [vmem:[%s2 + $0x1e8] sm:$0xff]
    %v627 = vld [vmem:[%s2 + $0x1f0] sm:$0xff]
    %v628 = vld [vmem:[%s2 + $0x1f8] sm:$0xff]
    %v629 = vld [vmem:[%s2 + $0x200] sm:$0xff]
    %v630 = vld [vmem:[%s2 + $0x208] sm:$0xff]
    %v631 = vld [vmem:[%s2 + $0x210] sm:$0xff]
    %v632 = vld [vmem:[%s2 + $0x218] sm:$0xff]
    %v633 = vld [vmem:[%s2 + $0x220] sm:$0xff]
    %v634 = vld [vmem:[%s2 + $0x228] sm:$0xff]
    %v635 = vld [vmem:[%s2 + $0x230] sm:$0xff]
    %v636 = vld [vmem:[%s2 + $0x238] sm:$0xff]
    %v637 = vld [vmem:[%s2 + $0x240] sm:$0xff]
    %v638 = vld [vmem:[%s2 + $0x248] sm:$0xff]
    %v639 = vld [vmem:[%s2 + $0x250] sm:$0xff]
    %v640 = vld [vmem:[%s2 + $0x258] sm:$0xff]
    %v641 = vld [vmem:[%s2 + $0x260] sm:$0xff]
    %v642 = vld [vmem:[%s2 + $0x268] sm:$0xff]
    %v643 = vld [vmem:[%s2 + $0x270] sm:$0xff]
    %v644 = vld [vmem:[%s2 + $0x278] sm:$0xff]
    %v645 = vld [vmem:[%s2 + $0x280] sm:$0xff]
    %v646 = vld [vmem:[%s2 + $0x288] sm:$0xff]
    %v647 = vld [vmem:[%s2 + $0x290] sm:$0xff]
    %v648 = vld [vmem:[%s2 + $0x298] sm:$0xff]
    %v649 = vld [vmem:[%s2 + $0x2a0] sm:$0xff]
    %v650 = vld [vmem:[%s2 + $0x2a8] sm:$0xff]
    %v651 = vld [vmem:[%s2 + $0x2b0] sm:$0xff]
    %v652 = vld [vmem:[%s2 + $0x2b8] sm:$0xff]
    %v653 = vld [vmem:[%s2 + $0x2c0] sm:$0xff]
    %v654 = vld [vmem:[%s2 + $0x2c8] sm:$0xff]
    %v655 = vld [vmem:[%s2 + $0x2d0] sm:$0xff]
    %v656 = vld [vmem:[%s2 + $0x2d8] sm:$0xff]
    %v657 = vld [vmem:[%s2 + $0x2e0] sm:$0xff]
    %v658 = vld [vmem:[%s2 + $0x2e8] sm:$0xff]
    %v659 = vld [vmem:[%s2 + $0x2f0] sm:$0xff]
    %v660 = vld [vmem:[%s2 + $0x2f8] sm:$0xff]
    %v661 = vld [vmem:[%s2 + $0x300] sm:$0xff]
    %v662 = vld [vmem:[%s2 + $0x308] sm:$0xff]
    %v663 = vld [vmem:[%s2 + $0x310] sm:$0xff]
    %v664 = vld [vmem:[%s2 + $0x318] sm:$0xff]
    %v665 = vld [vmem:[%s2 + $0x320] sm:$0xff]
    %v666 = vld [vmem:[%s2 + $0x328] sm:$0xff]
    %v667 = vld [vmem:[%s2 + $0x330] sm:$0xff]
    %v668 = vld [vmem:[%s2 + $0x338] sm:$0xff]
    %v669 = vld [vmem:[%s2 + $0x340] sm:$0xff]
    %v670 = vld [vmem:[%s2 + $0x348] sm:$0xff]
    %v671 = vld [vmem:[%s2 + $0x350] sm:$0xff]
    %v672 = vld [vmem:[%s2 + $0x358] sm:$0xff]
    %v673 = vld [vmem:[%s2 + $0x360] sm:$0xff]
    %v674 = vld [vmem:[%s2 + $0x368] sm:$0xff]
    %v675 = vld [vmem:[%s2 + $0x370] sm:$0xff]
    %v676 = vld [vmem:[%s2 + $0x378] sm:$0xff]
    %v677 = vld [vmem:[%s2 + $0x380] sm:$0xff]
    %v678 = vld [vmem:[%s2 + $0x388] sm:$0xff]
    %v679 = vld [vmem:[%s2 + $0x390] sm:$0xff]
    %v680 = vld [vmem:[%s2 + $0x398] sm:$0xff]
    %v681 = vld [vmem:[%s2 + $0x3a0] sm:$0xff]
    %v682 = vld [vmem:[%s2 + $0x3a8] sm:$0xff]
    %v683 = vld [vmem:[%s2 + $0x3b0] sm:$0xff]
    %v684 = vld [vmem:[%s2 + $0x3b8] sm:$0xff]
    %v685 = vld [vmem:[%s2 + $0x3c0] sm:$0xff]
    %v686 = vld [vmem:[%s2 + $0x3c8] sm:$0xff]
    %v687 = vld [vmem:[%s2 + $0x3d0] sm:$0xff]
    %v688 = vld [vmem:[%s2 + $0x3d8] sm:$0xff]
    %v689 = vld [vmem:[%s2 + $0x3e0] sm:$0xff]
    %v690 = vld [vmem:[%s2 + $0x3e8] sm:$0xff]
    %v691 = vld [vmem:[%s2 + $0x3f0] sm:$0xff]
    %v692 = vld [vmem:[%s2 + $0x3f8] sm:$0xff]
    %v693 = vld [vmem:[%s2 + $0x400] sm:$0xff]
    %v694 = vld [vmem:[%s2 + $0x408] sm:$0xff]
    %v695 = vld [vmem:[%s2 + $0x410] sm:$0xff]
    %v696 = vld [vmem:[%s2 + $0x418] sm:$0xff]
    %v697 = vld [vmem:[%s2 + $0x420] sm:$0xff]
    %v698 = vld [vmem:[%s2 + $0x428] sm:$0xff]
    %v699 = vld [vmem:[%s2 + $0x430] sm:$0xff]
    %v700 = vld [vmem:[%s2 + $0x438] sm:$0xff]
    %v701 = vld [vmem:[%s2 + $0x440] sm:$0xff]
    %v702 = vld [vmem:[%s2 + $0x448] sm:$0xff]
    %v703 = vld [vmem:[%s2 + $0x450] sm:$0xff]
    %v704 = vld [vmem:[%s2 + $0x458] sm:$0xff]
    %v705 = vld [vmem:[%s2 + $0x460] sm:$0xff]
    %v706 = vld [vmem:[%s2 + $0x468] sm:$0xff]
    %v707 = vld [vmem:[%s2 + $0x470] sm:$0xff]
    %v708 = vld [vmem:[%s2 + $0x478] sm:$0xff]
    %v709 = vld [vmem:[%s2 + $0x480] sm:$0xff]
    %v710 = vld [vmem:[%s2 + $0x488] sm:$0xff]
    %v711 = vld [vmem:[%s2 + $0x490] sm:$0xff]
    %v712 = vld [vmem:[%s2 + $0x498] sm:$0xff]
    %v713 = vld [vmem:[%s2 + $0x4a0] sm:$0xff]
    %v714 = vld [vmem:[%s2 + $0x4a8] sm:$0xff]
    %v715 = vld [vmem:[%s2 + $0x4b0] sm:$0xff]
    %v716 = vld [vmem:[%s2 + $0x4b8] sm:$0xff]
    %v717 = vld [vmem:[%s2 + $0x4c0] sm:$0xff]
    %v718 = vld [vmem:[%s2 + $0x4c8] sm:$0xff]
    %v719 = vld [vmem:[%s2 + $0x4d0] sm:$0xff]
    %v720 = vld [vmem:[%s2 + $0x4d8] sm:$0xff]
    %v721 = vld [vmem:[%s2 + $0x4e0] sm:$0xff]
    %v722 = vld [vmem:[%s2 + $0x4e8] sm:$0xff]
    %v723 = vld [vmem:[%s2 + $0x4f0] sm:$0xff]
    %v724 = vld [vmem:[%s2 + $0x4f8] sm:$0xff]
    %v725 = vld [vmem:[%s2 + $0x500] sm:$0xff]
    %v726 = vld [vmem:[%s2 + $0x508] sm:$0xff]
    %v727 = vld [vmem:[%s2 + $0x510] sm:$0xff]
    %v728 = vld [vmem:[%s2 + $0x518] sm:$0xff]
    %v729 = vld [vmem:[%s2 + $0x520] sm:$0xff]
    %v730 = vld [vmem:[%s2 + $0x528] sm:$0xff]
    %v731 = vld [vmem:[%s2 + $0x530] sm:$0xff]
    %v732 = vld [vmem:[%s2 + $0x538] sm:$0xff]
    %v733 = vld [vmem:[%s2 + $0x540] sm:$0xff]
    %v734 = vld [vmem:[%s2 + $0x548] sm:$0xff]
    %v735 = vld [vmem:[%s2 + $0x550] sm:$0xff]
    %v736 = vld [vmem:[%s2 + $0x558] sm:$0xff]
    %v737 = vld [vmem:[%s2 + $0x560] sm:$0xff]
    %v738 = vld [vmem:[%s2 + $0x568] sm:$0xff]
    %v739 = vld [vmem:[%s2 + $0x570] sm:$0xff]
    %v740 = vld [vmem:[%s2 + $0x578] sm:$0xff]
    %v741 = vld [vmem:[%s2 + $0x580] sm:$0xff]
    %v742 = vld [vmem:[%s2 + $0x588] sm:$0xff]
    %v743 = vld [vmem:[%s2 + $0x590] sm:$0xff]
    %v744 = vld [vmem:[%s2 + $0x598] sm:$0xff]
    %v745 = vld [vmem:[%s2 + $0x5a0] sm:$0xff]
    %v746 = vld [vmem:[%s2 + $0x5a8] sm:$0xff]
    %v747 = vld [vmem:[%s2 + $0x5b0] sm:$0xff]
    %v748 = vld [vmem:[%s2 + $0x5b8] sm:$0xff]
    %v749 = vld [vmem:[%s2 + $0x5c0] sm:$0xff]
    %v750 = vld [vmem:[%s2 + $0x5c8] sm:$0xff]
    %v751 = vld [vmem:[%s2 + $0x5d0] sm:$0xff]
    %v752 = vld [vmem:[%s2 + $0x5d8] sm:$0xff]
    %v753 = vld [vmem:[%s2 + $0x5e0] sm:$0xff]
    %v754 = vld [vmem:[%s2 + $0x5e8] sm:$0xff]
    %v755 = vld [vmem:[%s2 + $0x5f0] sm:$0xff]
    %v756 = vld [vmem:[%s2 + $0x5f8] sm:$0xff]
    %v757 = vld [vmem:[%s2 + $0x600] sm:$0xff]
    %v758 = vld [vmem:[%s2 + $0x608] sm:$0xff]
    %v759 = vld [vmem:[%s2 + $0x610] sm:$0xff]
    %v760 = vld [vmem:[%s2 + $0x618] sm:$0xff]
    %v761 = vld [vmem:[%s6] ss:$8 sm:$0x3]
    %v763 = vlaneseq
    %v764 = vshrl.u32 %v763, 7
    %v765 = vsub.s32 0, %v764
    %v766 = vrot.slane %v761, %v765
    %v767 = vlaneseq
    %v768 = vshrl.u32 %v767, 7
    %v769 = vsub.s32 1, %v768
    %v770 = vrot.slane %v761, %v769
    %v775 = vcombine.high %v563, %v563
    %v777 = vunpack.c.l.s4 1983009808
    %v778 = vunpack.c.0.s8 %v777
    %v779 = vlaneseq
    %v780 = vshrl.u32 %v779, 7
    %v781 = vsub.s32 %v778, %v780
    %v782 = vrot.slane %v563, %v781
    %v784 = vunpack.c.l.s4 1983009808
    %v785 = vunpack.c.0.s8 %v784
    %v786 = vlaneseq
    %v787 = vshrl.u32 %v786, 7
    %v788 = vsub.s32 %v785, %v787
    %v789 = vrot.slane %v775, %v788
    %v790 = vcombine.high %v782, %v782
    %v791 = vcombine.high %v789, %v789
    %v792 = vcombine.high %v564, %v564
    %v794 = vunpack.c.l.s4 1983009808
    %v795 = vunpack.c.0.s8 %v794
    %v796 = vlaneseq
    %v797 = vshrl.u32 %v796, 7
    %v798 = vsub.s32 %v795, %v797
    %v799 = vrot.slane %v564, %v798
    %v801 = vunpack.c.l.s4 1983009808
    %v802 = vunpack.c.0.s8 %v801
    %v803 = vlaneseq
    %v804 = vshrl.u32 %v803, 7
    %v805 = vsub.s32 %v802, %v804
    %v806 = vrot.slane %v792, %v805
    %v807 = vcombine.high %v799, %v799
    %vm814 = vcmask 130048
    %v815 = vsel %vm814, %v806, 0
    %817 = vmatprep.subr.mxu0 %v566
    %818 = vmatpush1.msra.mxu0 %v565
    %819 = vmatprep.subr.mxu0 %v568
    %820 = vmatpush1.msra.mxu0 %v567
    %821 = vmatprep.subr.mxu0 %v570
    %822 = vmatpush1.msra.mxu0 %v569
    %823 = vmatprep.subr.mxu0 %v572
    %824 = vmatpush1.msra.mxu0 %v571
    %825 = vmatprep.subr.mxu0 %v574
    %826 = vmatpush1.msra.mxu0 %v573
    %827 = vmatprep.subr.mxu0 %v576
    %828 = vmatpush1.msra.mxu0 %v575
    %829 = vmatprep.subr.mxu0 %v578
    %830 = vmatpush1.msra.mxu0 %v577
    %831 = vmatprep.subr.mxu0 %v580
    %832 = vmatpush1.msra.mxu0 %v579
    %833 = vmatprep.subr.mxu0 %v582
    %834 = vmatpush1.msra.mxu0 %v581
    %835 = vmatprep.subr.mxu0 %v584
    %836 = vmatpush1.msra.mxu0 %v583
    %837 = vmatprep.subr.mxu0 %v586
    %838 = vmatpush1.msra.mxu0 %v585
    %839 = vmatprep.subr.mxu0 %v588
    %840 = vmatpush1.msra.mxu0 %v587
    %841 = vmatprep.subr.mxu0 %v590
    %842 = vmatpush1.msra.mxu0 %v589
    %843 = vmatprep.subr.mxu0 %v592
    %844 = vmatpush1.msra.mxu0 %v591
    %845 = vmatprep.subr.mxu0 %v594
    %846 = vmatpush1.msra.mxu0 %v593
    %847 = vmatprep.subr.mxu0 %v596
    %848 = vmatpush1.msra.mxu0 %v595
    %849 = vmatprep.subr.mxu0 %v598
    %850 = vmatpush1.msra.mxu0 %v597
    %851 = vmatprep.subr.mxu0 %v600
    %852 = vmatpush1.msra.mxu0 %v599
    %853 = vmatprep.subr.mxu0 %v602
    %854 = vmatpush1.msra.mxu0 %v601
    %855 = vmatprep.subr.mxu0 %v604
    %856 = vmatpush1.msra.mxu0 %v603
    %857 = vmatprep.subr.mxu0 %v606
    %858 = vmatpush1.msra.mxu0 %v605
    %859 = vmatprep.subr.mxu0 %v608
    %860 = vmatpush1.msra.mxu0 %v607
    %861 = vmatprep.subr.mxu0 %v610
    %862 = vmatpush1.msra.mxu0 %v609
    %863 = vmatprep.subr.mxu0 %v612
    %864 = vmatpush1.msra.mxu0 %v611
    %865 = vmatprep.subr.mxu0 %v614
    %866 = vmatpush1.msra.mxu0 %v613
    %867 = vmatprep.subr.mxu0 %v616
    %868 = vmatpush1.msra.mxu0 %v615
    %869 = vmatprep.subr.mxu0 %v618
    %870 = vmatpush1.msra.mxu0 %v617
    %871 = vmatprep.subr.mxu0 %v620
    %872 = vmatpush1.msra.mxu0 %v619
    %873 = vmatprep.subr.mxu0 %v622
    %874 = vmatpush1.msra.mxu0 %v621
    %875 = vmatprep.subr.mxu0 %v624
    %876 = vmatpush1.msra.mxu0 %v623
    %877 = vmatprep.subr.mxu0 %v626
    %878 = vmatpush1.msra.mxu0 %v625
    %879 = vmatprep.subr.mxu0 %v628
    %880 = vmatpush1.msra.mxu0 %v627
    %881 = vmatprep.mubr.f32.mxu0 %v790
    %882 = vmatmul.mubr.f32.gmra.mrb[0].mxu0 %v782
    %v883 = vpop.f32.mrb[0].mxu0
    %v884 = vadd.f32 %v766, %v883
    %v885 = vpop.f32.mrb[0].mxu0
    %v886 = vadd.f32 %v770, %v885
    %887 = vdwg.mxu0
    %888 = vmatprep.subr.mxu0 %v630
    %889 = vmatpush1.msra.mxu0 %v629
    %890 = vmatprep.subr.mxu0 %v632
    %891 = vmatpush1.msra.mxu0 %v631
    %892 = vmatprep.subr.mxu0 %v634
    %893 = vmatpush1.msra.mxu0 %v633
    %894 = vmatprep.subr.mxu0 %v636
    %895 = vmatpush1.msra.mxu0 %v635
    %896 = vmatprep.subr.mxu0 %v638
    %897 = vmatpush1.msra.mxu0 %v637
    %898 = vmatprep.subr.mxu0 %v640
    %899 = vmatpush1.msra.mxu0 %v639
    %900 = vmatprep.subr.mxu0 %v642
    %901 = vmatpush1.msra.mxu0 %v641
    %902 = vmatprep.subr.mxu0 %v644
    %903 = vmatpush1.msra.mxu0 %v643
    %904 = vmatprep.subr.mxu0 %v646
    %905 = vmatpush1.msra.mxu0 %v645
    %906 = vmatprep.subr.mxu0 %v648
    %907 = vmatpush1.msra.mxu0 %v647
    %908 = vmatprep.subr.mxu0 %v650
    %909 = vmatpush1.msra.mxu0 %v649
    %910 = vmatprep.subr.mxu0 %v652
    %911 = vmatpush1.msra.mxu0 %v651
    %912 = vmatprep.subr.mxu0 %v654
    %913 = vmatpush1.msra.mxu0 %v653
    %914 = vmatprep.subr.mxu0 %v656
    %915 = vmatpush1.msra.mxu0 %v655
    %916 = vmatprep.subr.mxu0 %v658
    %917 = vmatpush1.msra.mxu0 %v657
    %918 = vmatprep.subr.mxu0 %v660
    %919 = vmatpush1.msra.mxu0 %v659
    %920 = vmatprep.subr.mxu0 %v662
    %921 = vmatpush1.msra.mxu0 %v661
    %922 = vmatprep.subr.mxu0 %v664
    %923 = vmatpush1.msra.mxu0 %v663
    %924 = vmatprep.subr.mxu0 %v666
    %925 = vmatpush1.msra.mxu0 %v665
    %926 = vmatprep.subr.mxu0 %v668
    %927 = vmatpush1.msra.mxu0 %v667
    %928 = vmatprep.subr.mxu0 %v670
    %929 = vmatpush1.msra.mxu0 %v669
    %930 = vmatprep.subr.mxu0 %v672
    %931 = vmatpush1.msra.mxu0 %v671
    %932 = vmatprep.subr.mxu0 %v674
    %933 = vmatpush1.msra.mxu0 %v673
    %934 = vmatprep.subr.mxu0 %v676
    %935 = vmatpush1.msra.mxu0 %v675
    %936 = vmatprep.subr.mxu0 %v678
    %937 = vmatpush1.msra.mxu0 %v677
    %938 = vmatprep.subr.mxu0 %v680
    %939 = vmatpush1.msra.mxu0 %v679
    %940 = vmatprep.subr.mxu0 %v682
    %941 = vmatpush1.msra.mxu0 %v681
    %942 = vmatprep.subr.mxu0 %v684
    %943 = vmatpush1.msra.mxu0 %v683
    %944 = vmatprep.subr.mxu0 %v686
    %945 = vmatpush1.msra.mxu0 %v685
    %946 = vmatprep.subr.mxu0 %v688
    %947 = vmatpush1.msra.mxu0 %v687
    %948 = vmatprep.subr.mxu0 %v690
    %949 = vmatpush1.msra.mxu0 %v689
    %950 = vmatprep.subr.mxu0 %v692
    %951 = vmatpush1.msra.mxu0 %v691
    %952 = vmatprep.mubr.f32.mxu0 %v791
    %953 = vmatmul.mubr.f32.gmra.mrb[0].mxu0 %v789
    %v954 = vpop.f32.mrb[0].mxu0
    %v955 = vadd.f32 %v884, %v954
    %v956 = vpop.f32.mrb[0].mxu0
    %v957 = vadd.f32 %v886, %v956
    %958 = vdwg.mxu0
    %959 = vmatprep.subr.mxu0 %v694
    %960 = vmatpush1.msra.mxu0 %v693
    %961 = vmatprep.subr.mxu0 %v696
    %962 = vmatpush1.msra.mxu0 %v695
    %963 = vmatprep.subr.mxu0 %v698
    %964 = vmatpush1.msra.mxu0 %v697
    %965 = vmatprep.subr.mxu0 %v700
    %966 = vmatpush1.msra.mxu0 %v699
    %967 = vmatprep.subr.mxu0 %v702
    %968 = vmatpush1.msra.mxu0 %v701
    %969 = vmatprep.subr.mxu0 %v704
    %970 = vmatpush1.msra.mxu0 %v703
    %971 = vmatprep.subr.mxu0 %v706
    %972 = vmatpush1.msra.mxu0 %v705
    %973 = vmatprep.subr.mxu0 %v708
    %974 = vmatpush1.msra.mxu0 %v707
    %975 = vmatprep.subr.mxu0 %v710
    %976 = vmatpush1.msra.mxu0 %v709
    %977 = vmatprep.subr.mxu0 %v712
    %978 = vmatpush1.msra.mxu0 %v711
    %979 = vmatprep.subr.mxu0 %v714
    %980 = vmatpush1.msra.mxu0 %v713
    %981 = vmatprep.subr.mxu0 %v716
    %982 = vmatpush1.msra.mxu0 %v715
    %983 = vmatprep.subr.mxu0 %v718
    %984 = vmatpush1.msra.mxu0 %v717
    %985 = vmatprep.subr.mxu0 %v720
    %986 = vmatpush1.msra.mxu0 %v719
    %987 = vmatprep.subr.mxu0 %v722
    %988 = vmatpush1.msra.mxu0 %v721
    %989 = vmatprep.subr.mxu0 %v724
    %990 = vmatpush1.msra.mxu0 %v723
    %991 = vmatprep.subr.mxu0 %v726
    %992 = vmatpush1.msra.mxu0 %v725
    %993 = vmatprep.subr.mxu0 %v728
    %994 = vmatpush1.msra.mxu0 %v727
    %995 = vmatprep.subr.mxu0 %v730
    %996 = vmatpush1.msra.mxu0 %v729
    %997 = vmatprep.subr.mxu0 %v732
    %998 = vmatpush1.msra.mxu0 %v731
    %999 = vmatprep.subr.mxu0 %v734
    %1000 = vmatpush1.msra.mxu0 %v733
    %1001 = vmatprep.subr.mxu0 %v736
    %1002 = vmatpush1.msra.mxu0 %v735
    %1003 = vmatprep.subr.mxu0 %v738
    %1004 = vmatpush1.msra.mxu0 %v737
    %1005 = vmatprep.subr.mxu0 %v740
    %1006 = vmatpush1.msra.mxu0 %v739
    %1007 = vmatprep.subr.mxu0 %v742
    %1008 = vmatpush1.msra.mxu0 %v741
    %1009 = vmatprep.subr.mxu0 %v744
    %1010 = vmatpush1.msra.mxu0 %v743
    %1011 = vmatprep.subr.mxu0 %v746
    %1012 = vmatpush1.msra.mxu0 %v745
    %1013 = vmatprep.subr.mxu0 %v748
    %1014 = vmatpush1.msra.mxu0 %v747
    %1015 = vmatprep.subr.mxu0 %v750
    %1016 = vmatpush1.msra.mxu0 %v749
    %1017 = vmatprep.subr.mxu0 %v752
    %1018 = vmatpush1.msra.mxu0 %v751
    %1019 = vmatprep.subr.mxu0 %v754
    %1020 = vmatpush1.msra.mxu0 %v753
    %1021 = vmatprep.subr.mxu0 %v756
    %1022 = vmatpush1.msra.mxu0 %v755
    %1023 = vmatprep.mubr.f32.mxu0 %v807
    %1024 = vmatmul.mubr.f32.gmra.mrb[0].mxu0 %v799
    %v1025 = vpop.f32.mrb[0].mxu0
    %v1026 = vadd.f32 %v955, %v1025
    %v1027 = vpop.f32.mrb[0].mxu0
    %v1028 = vadd.f32 %v957, %v1027
    %1029 = vdwg.mxu0
    %1030 = vmatprep.subr.mxu0 %v758
    %1031 = vmatpush1.msra.mxu0 %v757
    %1032 = vmatprep.subr.mxu0 %v760
    %1033 = vmatpush1.msra.mxu0 %v759
    %1034 = vmatprep.subr.mxu0 0.0
    %1035 = vmatpush1.msra.mxu0 0.0
    %1036 = vmatprep.subr.mxu0 0.0
    %1037 = vmatpush1.msra.mxu0 0.0
    %1038 = vmatprep.subr.mxu0 0.0
    %1039 = vmatpush1.msra.mxu0 0.0
    %1040 = vmatprep.subr.mxu0 0.0
    %1041 = vmatpush1.msra.mxu0 0.0
    %1042 = vmatprep.subr.mxu0 0.0
    %1043 = vmatpush1.msra.mxu0 0.0
    %1044 = vmatprep.subr.mxu0 0.0
    %1045 = vmatpush1.msra.mxu0 0.0
    %1046 = vmatprep.subr.mxu0 0.0
    %1047 = vmatpush1.msra.mxu0 0.0
    %1048 = vmatprep.subr.mxu0 0.0
    %1049 = vmatpush1.msra.mxu0 0.0
    %1050 = vmatprep.subr.mxu0 0.0
    %1051 = vmatpush1.msra.mxu0 0.0
    %1052 = vmatprep.subr.mxu0 0.0
    %1053 = vmatpush1.msra.mxu0 0.0
    %1054 = vmatprep.subr.mxu0 0.0
    %1055 = vmatpush1.msra.mxu0 0.0
    %1056 = vmatprep.subr.mxu0 0.0
    %1057 = vmatpush1.msra.mxu0 0.0
    %1058 = vmatprep.subr.mxu0 0.0
    %1059 = vmatpush1.msra.mxu0 0.0
    %1060 = vmatprep.subr.mxu0 0.0
    %1061 = vmatpush1.msra.mxu0 0.0
    %1062 = vmatprep.subr.mxu0 0.0
    %1063 = vmatpush1.msra.mxu0 0.0
    %1064 = vmatprep.subr.mxu0 0.0
    %1065 = vmatpush1.msra.mxu0 0.0
    %1066 = vmatprep.subr.mxu0 0.0
    %1067 = vmatpush1.msra.mxu0 0.0
    %1068 = vmatprep.subr.mxu0 0.0
    %1069 = vmatpush1.msra.mxu0 0.0
    %1070 = vmatprep.subr.mxu0 0.0
    %1071 = vmatpush1.msra.mxu0 0.0
    %1072 = vmatprep.subr.mxu0 0.0
    %1073 = vmatpush1.msra.mxu0 0.0
    %1074 = vmatprep.subr.mxu0 0.0
    %1075 = vmatpush1.msra.mxu0 0.0
    %1076 = vmatprep.subr.mxu0 0.0
    %1077 = vmatpush1.msra.mxu0 0.0
    %1078 = vmatprep.subr.mxu0 0.0
    %1079 = vmatpush1.msra.mxu0 0.0
    %1080 = vmatprep.subr.mxu0 0.0
    %1081 = vmatpush1.msra.mxu0 0.0
    %1082 = vmatprep.subr.mxu0 0.0
    %1083 = vmatpush1.msra.mxu0 0.0
    %1084 = vmatprep.subr.mxu0 0.0
    %1085 = vmatpush1.msra.mxu0 0.0
    %1086 = vmatprep.subr.mxu0 0.0
    %1087 = vmatpush1.msra.mxu0 0.0
    %1088 = vmatprep.subr.mxu0 0.0
    %1089 = vmatpush1.msra.mxu0 0.0
    %1090 = vmatprep.subr.mxu0 0.0
    %1091 = vmatpush1.msra.mxu0 0.0
    %1092 = vmatprep.subr.mxu0 0.0
    %1093 = vmatpush1.msra.mxu0 0.0
    %1094 = vmatprep.mubr.f32.mxu0 0.0
    %1095 = vmatmul.mubr.f32.gmra.mrb[0].mxu0 %v815
    %v1096 = vpop.f32.mrb[0].mxu0
    %v1097 = vadd.f32 %v1026, %v1096
    %v1098 = vpop.f32.mrb[0].mxu0
    %v1099 = vadd.f32 %v1028, %v1098
    %1100 = vdwg.mxu0
    %v1101 = vtanh.pop %v1097
    %v1102 = vtanh.pop %v1099
    %v1103 = vld [vmem:[%s3] sm:$0xff]
    %v1104 = vld [vmem:[%s3 + $0x8] sm:$0xff]
    %v1105 = vld [vmem:[%s3 + $0x10] sm:$0xff]
    %v1106 = vld [vmem:[%s3 + $0x18] sm:$0xff]
    %v1107 = vld [vmem:[%s3 + $0x20] sm:$0xff]
    %v1108 = vld [vmem:[%s3 + $0x28] sm:$0xff]
    %v1109 = vld [vmem:[%s3 + $0x30] sm:$0xff]
    %v1110 = vld [vmem:[%s3 + $0x38] sm:$0xff]
    %v1111 = vld [vmem:[%s3 + $0x40] sm:$0xff]
    %v1112 = vld [vmem:[%s3 + $0x48] sm:$0xff]
    %v1113 = vld [vmem:[%s3 + $0x50] sm:$0xff]
    %v1114 = vld [vmem:[%s3 + $0x58] sm:$0xff]
    %v1115 = vld [vmem:[%s3 + $0x60] sm:$0xff]
    %v1116 = vld [vmem:[%s3 + $0x68] sm:$0xff]
    %v1117 = vld [vmem:[%s3 + $0x70] sm:$0xff]
    %v1118 = vld [vmem:[%s3 + $0x78] sm:$0xff]
    %v1119 = vld [vmem:[%s3 + $0x80] sm:$0xff]
    %v1120 = vld [vmem:[%s3 + $0x88] sm:$0xff]
    %v1121 = vld [vmem:[%s3 + $0x90] sm:$0xff]
    %v1122 = vld [vmem:[%s3 + $0x98] sm:$0xff]
    %v1123 = vld [vmem:[%s3 + $0xa0] sm:$0xff]
    %v1124 = vld [vmem:[%s3 + $0xa8] sm:$0xff]
    %v1125 = vld [vmem:[%s3 + $0xb0] sm:$0xff]
    %v1126 = vld [vmem:[%s3 + $0xb8] sm:$0xff]
    %v1127 = vld [vmem:[%s3 + $0xc0] sm:$0xff]
    %v1128 = vld [vmem:[%s3 + $0xc8] sm:$0xff]
    %v1129 = vld [vmem:[%s3 + $0xd0] sm:$0xff]
    %v1130 = vld [vmem:[%s3 + $0xd8] sm:$0xff]
    %v1131 = vld [vmem:[%s3 + $0xe0] sm:$0xff]
    %v1132 = vld [vmem:[%s3 + $0xe8] sm:$0xff]
    %v1133 = vld [vmem:[%s3 + $0xf0] sm:$0xff]
    %v1134 = vld [vmem:[%s3 + $0xf8] sm:$0xff]
    %v1135 = vld [vmem:[%s3 + $0x100] sm:$0xff]
    %v1136 = vld [vmem:[%s3 + $0x108] sm:$0xff]
    %v1137 = vld [vmem:[%s3 + $0x110] sm:$0xff]
    %v1138 = vld [vmem:[%s3 + $0x118] sm:$0xff]
    %v1139 = vld [vmem:[%s3 + $0x120] sm:$0xff]
    %v1140 = vld [vmem:[%s3 + $0x128] sm:$0xff]
    %v1141 = vld [vmem:[%s3 + $0x130] sm:$0xff]
    %v1142 = vld [vmem:[%s3 + $0x138] sm:$0xff]
    %v1143 = vld [vmem:[%s3 + $0x140] sm:$0xff]
    %v1144 = vld [vmem:[%s3 + $0x148] sm:$0xff]
    %v1145 = vld [vmem:[%s3 + $0x150] sm:$0xff]
    %v1146 = vld [vmem:[%s3 + $0x158] sm:$0xff]
    %v1147 = vld [vmem:[%s3 + $0x160] sm:$0xff]
    %v1148 = vld [vmem:[%s3 + $0x168] sm:$0xff]
    %v1149 = vld [vmem:[%s3 + $0x170] sm:$0xff]
    %v1150 = vld [vmem:[%s3 + $0x178] sm:$0xff]
    %v1151 = vld [vmem:[%s3 + $0x180] sm:$0xff]
    %v1152 = vld [vmem:[%s3 + $0x188] sm:$0xff]
    %s1153 = scalar_lea.vmem %s6, 1
    %v1154 = vld [vmem:[%s1153] ss:$8 sm:$0x3]
    %v1156 = vlaneseq
    %v1157 = vshrl.u32 %v1156, 7
    %v1158 = vsub.s32 0, %v1157
    %v1159 = vrot.slane %v1154, %v1158
    %v1160 = vlaneseq
    %v1161 = vshrl.u32 %v1160, 7
    %v1162 = vsub.s32 1, %v1161
    %v1163 = vrot.slane %v1154, %v1162
    %vm1166 = vcmask 588800
    %v1168 = vsel %vm1166, %v1102, 0
    %1170 = vmatprep.subr.mxu0 %v1104
    %1171 = vmatpush1.msra.mxu0 %v1103
    %1172 = vmatprep.subr.mxu0 %v1106
    %1173 = vmatpush1.msra.mxu0 %v1105
    %1174 = vmatprep.subr.mxu0 %v1108
    %1175 = vmatpush1.msra.mxu0 %v1107
    %1176 = vmatprep.subr.mxu0 %v1110
    %1177 = vmatpush1.msra.mxu0 %v1109
    %1178 = vmatprep.subr.mxu0 %v1112
    %1179 = vmatpush1.msra.mxu0 %v1111
    %1180 = vmatprep.subr.mxu0 %v1114
    %1181 = vmatpush1.msra.mxu0 %v1113
    %1182 = vmatprep.subr.mxu0 %v1116
    %1183 = vmatpush1.msra.mxu0 %v1115
    %1184 = vmatprep.subr.mxu0 %v1118
    %1185 = vmatpush1.msra.mxu0 %v1117
    %1186 = vmatprep.subr.mxu0 %v1120
    %1187 = vmatpush1.msra.mxu0 %v1119
    %1188 = vmatprep.subr.mxu0 %v1122
    %1189 = vmatpush1.msra.mxu0 %v1121
    %1190 = vmatprep.subr.mxu0 %v1124
    %1191 = vmatpush1.msra.mxu0 %v1123
    %1192 = vmatprep.subr.mxu0 %v1126
    %1193 = vmatpush1.msra.mxu0 %v1125
    %1194 = vmatprep.subr.mxu0 %v1128
    %1195 = vmatpush1.msra.mxu0 %v1127
    %1196 = vmatprep.subr.mxu0 %v1130
    %1197 = vmatpush1.msra.mxu0 %v1129
    %1198 = vmatprep.subr.mxu0 %v1132
    %1199 = vmatpush1.msra.mxu0 %v1131
    %1200 = vmatprep.subr.mxu0 %v1134
    %1201 = vmatpush1.msra.mxu0 %v1133
    %1202 = vmatprep.subr.mxu0 %v1136
    %1203 = vmatpush1.msra.mxu0 %v1135
    %1204 = vmatprep.subr.mxu0 %v1138
    %1205 = vmatpush1.msra.mxu0 %v1137
    %1206 = vmatprep.subr.mxu0 %v1140
    %1207 = vmatpush1.msra.mxu0 %v1139
    %1208 = vmatprep.subr.mxu0 %v1142
    %1209 = vmatpush1.msra.mxu0 %v1141
    %1210 = vmatprep.subr.mxu0 %v1144
    %1211 = vmatpush1.msra.mxu0 %v1143
    %1212 = vmatprep.subr.mxu0 %v1146
    %1213 = vmatpush1.msra.mxu0 %v1145
    %1214 = vmatprep.subr.mxu0 %v1148
    %1215 = vmatpush1.msra.mxu0 %v1147
    %1216 = vmatprep.subr.mxu0 %v1150
    %1217 = vmatpush1.msra.mxu0 %v1149
    %1218 = vmatprep.subr.mxu0 %v1152
    %1219 = vmatpush1.msra.mxu0 %v1151
    %1220 = vmatprep.subr.mxu0 0.0
    %1221 = vmatpush1.msra.mxu0 0.0
    %1222 = vmatprep.subr.mxu0 0.0
    %1223 = vmatpush1.msra.mxu0 0.0
    %1224 = vmatprep.subr.mxu0 0.0
    %1225 = vmatpush1.msra.mxu0 0.0
    %1226 = vmatprep.subr.mxu0 0.0
    %1227 = vmatpush1.msra.mxu0 0.0
    %1228 = vmatprep.subr.mxu0 0.0
    %1229 = vmatpush1.msra.mxu0 0.0
    %1230 = vmatprep.subr.mxu0 0.0
    %1231 = vmatpush1.msra.mxu0 0.0
    %1232 = vmatprep.subr.mxu0 0.0
    %1233 = vmatpush1.msra.mxu0 0.0
    %1234 = vmatprep.mubr.f32.mxu0 %v1168
    %1235 = vmatmul.mubr.f32.gmra.mrb[0].mxu0 %v1101
    %v1236 = vpop.f32.mrb[0].mxu0
    %v1237 = vadd.f32 %v1159, %v1236
    %v1238 = vpop.f32.mrb[0].mxu0
    %v1239 = vadd.f32 %v1163, %v1238
    %1240 = vdwg.mxu0
    %v1241 = vtanh.pop %v1237
    %v1242 = vtanh.pop %v1239
    %v1243 = vld [vmem:[%s4] sm:$0xff]
    %v1244 = vld [vmem:[%s4 + $0x8] sm:$0xff]
    %v1245 = vld [vmem:[%s4 + $0x10] sm:$0xff]
    %v1246 = vld [vmem:[%s4 + $0x18] sm:$0xff]
    %v1247 = vld [vmem:[%s4 + $0x20] sm:$0xff]
    %v1248 = vld [vmem:[%s4 + $0x28] sm:$0xff]
    %v1249 = vld [vmem:[%s4 + $0x30] sm:$0xff]
    %v1250 = vld [vmem:[%s4 + $0x38] sm:$0xff]
    %v1251 = vld [vmem:[%s4 + $0x40] sm:$0xff]
    %v1252 = vld [vmem:[%s4 + $0x48] sm:$0xff]
    %v1253 = vld [vmem:[%s4 + $0x50] sm:$0xff]
    %v1254 = vld [vmem:[%s4 + $0x58] sm:$0xff]
    %v1255 = vld [vmem:[%s4 + $0x60] sm:$0xff]
    %v1256 = vld [vmem:[%s4 + $0x68] sm:$0xff]
    %v1257 = vld [vmem:[%s4 + $0x70] sm:$0xff]
    %v1258 = vld [vmem:[%s4 + $0x78] sm:$0xff]
    %v1259 = vld [vmem:[%s4 + $0x80] sm:$0xff]
    %v1260 = vld [vmem:[%s4 + $0x88] sm:$0xff]
    %v1261 = vld [vmem:[%s4 + $0x90] sm:$0xff]
    %v1262 = vld [vmem:[%s4 + $0x98] sm:$0xff]
    %v1263 = vld [vmem:[%s4 + $0xa0] sm:$0xff]
    %v1264 = vld [vmem:[%s4 + $0xa8] sm:$0xff]
    %v1265 = vld [vmem:[%s4 + $0xb0] sm:$0xff]
    %v1266 = vld [vmem:[%s4 + $0xb8] sm:$0xff]
    %v1267 = vld [vmem:[%s4 + $0xc0] sm:$0xff]
    %v1268 = vld [vmem:[%s4 + $0xc8] sm:$0xff]
    %v1269 = vld [vmem:[%s4 + $0xd0] sm:$0xff]
    %v1270 = vld [vmem:[%s4 + $0xd8] sm:$0xff]
    %v1271 = vld [vmem:[%s4 + $0xe0] sm:$0xff]
    %v1272 = vld [vmem:[%s4 + $0xe8] sm:$0xff]
    %v1273 = vld [vmem:[%s4 + $0xf0] sm:$0xff]
    %v1274 = vld [vmem:[%s4 + $0xf8] sm:$0xff]
    %v1275 = vld [vmem:[%s4 + $0x100] sm:$0xff]
    %v1276 = vld [vmem:[%s4 + $0x108] sm:$0xff]
    %v1277 = vld [vmem:[%s4 + $0x110] sm:$0xff]
    %v1278 = vld [vmem:[%s4 + $0x118] sm:$0xff]
    %v1279 = vld [vmem:[%s4 + $0x120] sm:$0xff]
    %v1280 = vld [vmem:[%s4 + $0x128] sm:$0xff]
    %v1281 = vld [vmem:[%s4 + $0x130] sm:$0xff]
    %v1282 = vld [vmem:[%s4 + $0x138] sm:$0xff]
    %v1283 = vld [vmem:[%s4 + $0x140] sm:$0xff]
    %v1284 = vld [vmem:[%s4 + $0x148] sm:$0xff]
    %v1285 = vld [vmem:[%s4 + $0x150] sm:$0xff]
    %v1286 = vld [vmem:[%s4 + $0x158] sm:$0xff]
    %v1287 = vld [vmem:[%s4 + $0x160] sm:$0xff]
    %v1288 = vld [vmem:[%s4 + $0x168] sm:$0xff]
    %v1289 = vld [vmem:[%s4 + $0x170] sm:$0xff]
    %v1290 = vld [vmem:[%s4 + $0x178] sm:$0xff]
    %v1291 = vld [vmem:[%s4 + $0x180] sm:$0xff]
    %v1292 = vld [vmem:[%s4 + $0x188] sm:$0xff]
    %s1293 = scalar_lea.vmem %s6, 2
    %v1294 = vld [vmem:[%s1293] ss:$8 sm:$0x3]
    %v1296 = vlaneseq
    %v1297 = vshrl.u32 %v1296, 7
    %v1298 = vsub.s32 0, %v1297
    %v1299 = vrot.slane %v1294, %v1298
    %v1300 = vlaneseq
    %v1301 = vshrl.u32 %v1300, 7
    %v1302 = vsub.s32 1, %v1301
    %v1303 = vrot.slane %v1294, %v1302
    %v1307 = vsel %vm1166, %v1242, 0
    %1309 = vmatprep.subr.mxu0 %v1244
    %1310 = vmatpush1.msra.mxu0 %v1243
    %1311 = vmatprep.subr.mxu0 %v1246
    %1312 = vmatpush1.msra.mxu0 %v1245
    %1313 = vmatprep.subr.mxu0 %v1248
    %1314 = vmatpush1.msra.mxu0 %v1247
    %1315 = vmatprep.subr.mxu0 %v1250
    %1316 = vmatpush1.msra.mxu0 %v1249
    %1317 = vmatprep.subr.mxu0 %v1252
    %1318 = vmatpush1.msra.mxu0 %v1251
    %1319 = vmatprep.subr.mxu0 %v1254
    %1320 = vmatpush1.msra.mxu0 %v1253
    %1321 = vmatprep.subr.mxu0 %v1256
    %1322 = vmatpush1.msra.mxu0 %v1255
    %1323 = vmatprep.subr.mxu0 %v1258
    %1324 = vmatpush1.msra.mxu0 %v1257
    %1325 = vmatprep.subr.mxu0 %v1260
    %1326 = vmatpush1.msra.mxu0 %v1259
    %1327 = vmatprep.subr.mxu0 %v1262
    %1328 = vmatpush1.msra.mxu0 %v1261
    %1329 = vmatprep.subr.mxu0 %v1264
    %1330 = vmatpush1.msra.mxu0 %v1263
    %1331 = vmatprep.subr.mxu0 %v1266
    %1332 = vmatpush1.msra.mxu0 %v1265
    %1333 = vmatprep.subr.mxu0 %v1268
    %1334 = vmatpush1.msra.mxu0 %v1267
    %1335 = vmatprep.subr.mxu0 %v1270
    %1336 = vmatpush1.msra.mxu0 %v1269
    %1337 = vmatprep.subr.mxu0 %v1272
    %1338 = vmatpush1.msra.mxu0 %v1271
    %1339 = vmatprep.subr.mxu0 %v1274
    %1340 = vmatpush1.msra.mxu0 %v1273
    %1341 = vmatprep.subr.mxu0 %v1276
    %1342 = vmatpush1.msra.mxu0 %v1275
    %1343 = vmatprep.subr.mxu0 %v1278
    %1344 = vmatpush1.msra.mxu0 %v1277
    %1345 = vmatprep.subr.mxu0 %v1280
    %1346 = vmatpush1.msra.mxu0 %v1279
    %1347 = vmatprep.subr.mxu0 %v1282
    %1348 = vmatpush1.msra.mxu0 %v1281
    %1349 = vmatprep.subr.mxu0 %v1284
    %1350 = vmatpush1.msra.mxu0 %v1283
    %1351 = vmatprep.subr.mxu0 %v1286
    %1352 = vmatpush1.msra.mxu0 %v1285
    %1353 = vmatprep.subr.mxu0 %v1288
    %1354 = vmatpush1.msra.mxu0 %v1287
    %1355 = vmatprep.subr.mxu0 %v1290
    %1356 = vmatpush1.msra.mxu0 %v1289
    %1357 = vmatprep.subr.mxu0 %v1292
    %1358 = vmatpush1.msra.mxu0 %v1291
    %1359 = vmatprep.subr.mxu0 0.0
    %1360 = vmatpush1.msra.mxu0 0.0
    %1361 = vmatprep.subr.mxu0 0.0
    %1362 = vmatpush1.msra.mxu0 0.0
    %1363 = vmatprep.subr.mxu0 0.0
    %1364 = vmatpush1.msra.mxu0 0.0
    %1365 = vmatprep.subr.mxu0 0.0
    %1366 = vmatpush1.msra.mxu0 0.0
    %1367 = vmatprep.subr.mxu0 0.0
    %1368 = vmatpush1.msra.mxu0 0.0
    %1369 = vmatprep.subr.mxu0 0.0
    %1370 = vmatpush1.msra.mxu0 0.0
    %1371 = vmatprep.subr.mxu0 0.0
    %1372 = vmatpush1.msra.mxu0 0.0
    %1373 = vmatprep.mubr.f32.mxu0 %v1307
    %1374 = vmatmul.mubr.f32.gmra.mrb[0].mxu0 %v1241
    %v1375 = vpop.f32.mrb[0].mxu0
    %v1376 = vadd.f32 %v1299, %v1375
    %v1377 = vpop.f32.mrb[0].mxu0
    %v1378 = vadd.f32 %v1303, %v1377
    %1379 = vdwg.mxu0
    %v1382 = vcombine.low %v1376, %v1378
    %v1384 = vunpack.c.l.s4 1983009808
    %v1385 = vunpack.c.0.s8 %v1384
    %v1386 = vlaneseq
    %v1387 = vshrl.u32 %v1386, 7
    %v1388 = vsub.s32 %v1385, %v1387
    %v1389 = vrot.slane %v1382, %v1388
    %1391 = vst [vmem:[#allocation7] sm:$0xf] %v1389
    %v1392 = vmul.f32 %v1378, 1.442695
    %v1393 = vpow.pop %v1392
    %v1394 = vlaneseq
    %v1395 = vshrl.u32 %v1394, 7
    %vm1396 = vcmp.ge.s32.totalorder %v1395, 0
    %vm1397 = vcmp.lt.s32.totalorder %v1395, 4
    %vm1398 = vmand %vm1396, %vm1397
    %v1399 = vlaneseq
    %v1400 = vshrl.u32 %v1399, 7
    %v1401 = vsub.s32 0, %v1400
    %v1402 = vrot.slane %v1376, %v1401
    %v1403 = vsel %vm1398, %v1402, 0.0
    %v1404 = vlaneseq
    %v1405 = vshrl.u32 %v1404, 7
    %v1406 = vsub.s32 0, %v1405
    %v1407 = vrot.slane %v1393, %v1406
    %v1408 = vsel %vm1398, %v1407, 0.0
    %vm1409 = vcmp.ge.s32.totalorder %v1395, 4
    %vm1410 = vcmp.lt.s32.totalorder %v1395, 8
    %vm1411 = vmand %vm1409, %vm1410
    %v1412 = vlaneseq
    %v1413 = vshrl.u32 %v1412, 7
    %v1414 = vsub.s32 1, %v1413
    %v1415 = vrot.slane %v1376, %v1414
    %v1416 = vsel %vm1411, %v1415, %v1403
    %v1417 = vlaneseq
    %v1418 = vshrl.u32 %v1417, 7
    %v1419 = vsub.s32 1, %v1418
    %v1420 = vrot.slane %v1393, %v1419
    %v1421 = vsel %vm1411, %v1420, %v1408
    %v1422 = vld [vmem:[%s1] sm:$0xff]
    %v1423 = vmul.f32 %v1421, %v1422
    %v1424 = vadd.f32 %v1416, %v1423
    %v1425 = vld [vmem:[%s5] sm:$0xff]
    %v1426 = vld [vmem:[%s5 + $0x8] sm:$0xff]
    %v1427 = vld [vmem:[%s5 + $0x10] sm:$0xff]
    %v1428 = vld [vmem:[%s5 + $0x18] sm:$0xff]
    %v1429 = vld [vmem:[%s5 + $0x20] sm:$0xff]
    %v1430 = vld [vmem:[%s5 + $0x28] sm:$0xff]
    %v1431 = vld [vmem:[%s5 + $0x30] sm:$0xff]
    %v1432 = vld [vmem:[%s5 + $0x38] sm:$0xff]
    %v1433 = vld [vmem:[%s5 + $0x40] sm:$0xff]
    %v1434 = vld [vmem:[%s5 + $0x48] sm:$0xff]
    %v1435 = vld [vmem:[%s5 + $0x50] sm:$0xff]
    %v1436 = vld [vmem:[%s5 + $0x58] sm:$0xff]
    %v1437 = vld [vmem:[%s5 + $0x60] sm:$0x3]
    %v1438 = vld [vmem:[%s5 + $0x68] sm:$0x3]
    %s1439 = scalar_lea.vmem %s6, 3
    %v1440 = vld [vmem:[%s1439] ss:$8 sm:$0x3]
    %v1442 = vlaneseq
    %v1443 = vshrl.u32 %v1442, 7
    %v1444 = vsub.s32 0, %v1443
    %v1445 = vrot.slane %v1440, %v1444
    %v1446 = vlaneseq
    %v1447 = vshrl.u32 %v1446, 7
    %v1448 = vsub.s32 1, %v1447
    %v1449 = vrot.slane %v1440, %v1448
    %vm1452 = vcmask 408576
    %v1454 = vsel %vm1452, %v1424, 0
    %vm1456 = vcmask 1041408
    %v1458 = vsel %vm1456, %v1437, 0
    %v1461 = vsel %vm1456, %v1438, 0
    %1463 = vmatprep.subr.mxu0 %v1426
    %1464 = vmatpush1.msra.mxu0 %v1425
    %1465 = vmatprep.subr.mxu0 %v1428
    %1466 = vmatpush1.msra.mxu0 %v1427
    %1467 = vmatprep.subr.mxu0 %v1430
    %1468 = vmatpush1.msra.mxu0 %v1429
    %1469 = vmatprep.subr.mxu0 %v1432
    %1470 = vmatpush1.msra.mxu0 %v1431
    %1471 = vmatprep.subr.mxu0 %v1434
    %1472 = vmatpush1.msra.mxu0 %v1433
    %1473 = vmatprep.subr.mxu0 %v1436
    %1474 = vmatpush1.msra.mxu0 %v1435
    %1475 = vmatprep.subr.mxu0 %v1461
    %1476 = vmatpush1.msra.mxu0 %v1458
    %1477 = vmatprep.subr.mxu0 0.0
    %1478 = vmatpush1.msra.mxu0 0.0
    %1479 = vmatprep.subr.mxu0 0.0
    %1480 = vmatpush1.msra.mxu0 0.0
    %1481 = vmatprep.subr.mxu0 0.0
    %1482 = vmatpush1.msra.mxu0 0.0
    %1483 = vmatprep.subr.mxu0 0.0
    %1484 = vmatpush1.msra.mxu0 0.0
    %1485 = vmatprep.subr.mxu0 0.0
    %1486 = vmatpush1.msra.mxu0 0.0
    %1487 = vmatprep.subr.mxu0 0.0
    %1488 = vmatpush1.msra.mxu0 0.0
    %1489 = vmatprep.subr.mxu0 0.0
    %1490 = vmatpush1.msra.mxu0 0.0
    %1491 = vmatprep.subr.mxu0 0.0
    %1492 = vmatpush1.msra.mxu0 0.0
    %1493 = vmatprep.subr.mxu0 0.0
    %1494 = vmatpush1.msra.mxu0 0.0
    %1495 = vmatprep.subr.mxu0 0.0
    %1496 = vmatpush1.msra.mxu0 0.0
    %1497 = vmatprep.subr.mxu0 0.0
    %1498 = vmatpush1.msra.mxu0 0.0
    %1499 = vmatprep.subr.mxu0 0.0
    %1500 = vmatpush1.msra.mxu0 0.0
    %1501 = vmatprep.subr.mxu0 0.0
    %1502 = vmatpush1.msra.mxu0 0.0
    %1503 = vmatprep.subr.mxu0 0.0
    %1504 = vmatpush1.msra.mxu0 0.0
    %1505 = vmatprep.subr.mxu0 0.0
    %1506 = vmatpush1.msra.mxu0 0.0
    %1507 = vmatprep.subr.mxu0 0.0
    %1508 = vmatpush1.msra.mxu0 0.0
    %1509 = vmatprep.subr.mxu0 0.0
    %1510 = vmatpush1.msra.mxu0 0.0
    %1511 = vmatprep.subr.mxu0 0.0
    %1512 = vmatpush1.msra.mxu0 0.0
    %1513 = vmatprep.subr.mxu0 0.0
    %1514 = vmatpush1.msra.mxu0 0.0
    %1515 = vmatprep.subr.mxu0 0.0
    %1516 = vmatpush1.msra.mxu0 0.0
    %1517 = vmatprep.subr.mxu0 0.0
    %1518 = vmatpush1.msra.mxu0 0.0
    %1519 = vmatprep.subr.mxu0 0.0
    %1520 = vmatpush1.msra.mxu0 0.0
    %1521 = vmatprep.subr.mxu0 0.0
    %1522 = vmatpush1.msra.mxu0 0.0
    %1523 = vmatprep.subr.mxu0 0.0
    %1524 = vmatpush1.msra.mxu0 0.0
    %1525 = vmatprep.subr.mxu0 0.0
    %1526 = vmatpush1.msra.mxu0 0.0
    %1527 = vmatprep.mubr.f32.mxu0 0.0
    %1528 = vmatmul.mubr.f32.gmra.mrb[0].mxu0 %v1454
    %v1529 = vpop.f32.mrb[0].mxu0
    %v1530 = vadd.f32 %v1445, %v1529
    %v1531 = vpop.f32.mrb[0].mxu0
    %v1532 = vadd.f32 %v1449, %v1531
    %1533 = vdwg.mxu0
    %v1534 = vtanh.pop %v1530
    %v1535 = vtanh.pop %v1532
    %s1536 = smul.u32 8, 25
    %s1537 = smul.u32 %s1536, 2
    %s1538 = sshll.u32 %s1537, 4
    %1539 = dma.done [#allocation4], %s1538
    %v1540 = vld [vmem:[#allocation2] sm:$0xff]
    %v1541 = vld [vmem:[#allocation2 + $0x8] sm:$0xff]
    %v1542 = vld [vmem:[#allocation2 + $0x10] sm:$0xff]
    %v1543 = vld [vmem:[#allocation2 + $0x18] sm:$0xff]
    %v1544 = vld [vmem:[#allocation2 + $0x20] sm:$0xff]
    %v1545 = vld [vmem:[#allocation2 + $0x28] sm:$0xff]
    %v1546 = vld [vmem:[#allocation2 + $0x30] sm:$0xff]
    %v1547 = vld [vmem:[#allocation2 + $0x38] sm:$0xff]
    %v1548 = vld [vmem:[#allocation2 + $0x40] sm:$0xff]
    %v1549 = vld [vmem:[#allocation2 + $0x48] sm:$0xff]
    %v1550 = vld [vmem:[#allocation2 + $0x50] sm:$0xff]
    %v1551 = vld [vmem:[#allocation2 + $0x58] sm:$0xff]
    %v1552 = vld [vmem:[#allocation2 + $0x60] sm:$0xff]
    %v1553 = vld [vmem:[#allocation2 + $0x68] sm:$0xff]
    %v1554 = vld [vmem:[#allocation2 + $0x70] sm:$0xff]
    %v1555 = vld [vmem:[#allocation2 + $0x78] sm:$0xff]
    %v1556 = vld [vmem:[#allocation2 + $0x80] sm:$0xff]
    %v1557 = vld [vmem:[#allocation2 + $0x88] sm:$0xff]
    %v1558 = vld [vmem:[#allocation2 + $0x90] sm:$0xff]
    %v1559 = vld [vmem:[#allocation2 + $0x98] sm:$0xff]
    %v1560 = vld [vmem:[#allocation2 + $0xa0] sm:$0xff]
    %v1561 = vld [vmem:[#allocation2 + $0xa8] sm:$0xff]
    %v1562 = vld [vmem:[#allocation2 + $0xb0] sm:$0xff]
    %v1563 = vld [vmem:[#allocation2 + $0xb8] sm:$0xff]
    %v1564 = vld [vmem:[#allocation2 + $0xc0] sm:$0xff]
    %v1565 = vld [vmem:[#allocation2 + $0xc8] sm:$0xff]
    %v1566 = vld [vmem:[#allocation2 + $0xd0] sm:$0xff]
    %v1567 = vld [vmem:[#allocation2 + $0xd8] sm:$0xff]
    %v1568 = vld [vmem:[#allocation2 + $0xe0] sm:$0xff]
    %v1569 = vld [vmem:[#allocation2 + $0xe8] sm:$0xff]
    %v1570 = vld [vmem:[#allocation2 + $0xf0] sm:$0xff]
    %v1571 = vld [vmem:[#allocation2 + $0xf8] sm:$0xff]
    %v1572 = vld [vmem:[#allocation2 + $0x100] sm:$0xff]
    %v1573 = vld [vmem:[#allocation2 + $0x108] sm:$0xff]
    %v1574 = vld [vmem:[#allocation2 + $0x110] sm:$0xff]
    %v1575 = vld [vmem:[#allocation2 + $0x118] sm:$0xff]
    %v1576 = vld [vmem:[#allocation2 + $0x120] sm:$0xff]
    %v1577 = vld [vmem:[#allocation2 + $0x128] sm:$0xff]
    %v1578 = vld [vmem:[#allocation2 + $0x130] sm:$0xff]
    %v1579 = vld [vmem:[#allocation2 + $0x138] sm:$0xff]
    %v1580 = vld [vmem:[#allocation2 + $0x140] sm:$0xff]
    %v1581 = vld [vmem:[#allocation2 + $0x148] sm:$0xff]
    %v1582 = vld [vmem:[#allocation2 + $0x150] sm:$0xff]
    %v1583 = vld [vmem:[#allocation2 + $0x158] sm:$0xff]
    %v1584 = vld [vmem:[#allocation2 + $0x160] sm:$0xff]
    %v1585 = vld [vmem:[#allocation2 + $0x168] sm:$0xff]
    %v1586 = vld [vmem:[#allocation2 + $0x170] sm:$0xff]
    %v1587 = vld [vmem:[#allocation2 + $0x178] sm:$0xff]
    %v1588 = vld [vmem:[#allocation2 + $0x180] sm:$0xff]
    %v1589 = vld [vmem:[#allocation2 + $0x188] sm:$0xff]
    %s1590 = scalar_lea.vmem %s6, 4
    %v1591 = vld [vmem:[%s1590] ss:$8 sm:$0x3]
    %v1593 = vlaneseq
    %v1594 = vshrl.u32 %v1593, 7
    %v1595 = vsub.s32 0, %v1594
    %v1596 = vrot.slane %v1591, %v1595
    %v1597 = vlaneseq
    %v1598 = vshrl.u32 %v1597, 7
    %v1599 = vsub.s32 1, %v1598
    %v1600 = vrot.slane %v1591, %v1599
    %v1604 = vsel %vm1166, %v1535, 0
    %1606 = vmatprep.subr.mxu0 %v1541
    %1607 = vmatpush1.msra.mxu0 %v1540
    %1608 = vmatprep.subr.mxu0 %v1543
    %1609 = vmatpush1.msra.mxu0 %v1542
    %1610 = vmatprep.subr.mxu0 %v1545
    %1611 = vmatpush1.msra.mxu0 %v1544
    %1612 = vmatprep.subr.mxu0 %v1547
    %1613 = vmatpush1.msra.mxu0 %v1546
    %1614 = vmatprep.subr.mxu0 %v1549
    %1615 = vmatpush1.msra.mxu0 %v1548
    %1616 = vmatprep.subr.mxu0 %v1551
    %1617 = vmatpush1.msra.mxu0 %v1550
    %1618 = vmatprep.subr.mxu0 %v1553
    %1619 = vmatpush1.msra.mxu0 %v1552
    %1620 = vmatprep.subr.mxu0 %v1555
    %1621 = vmatpush1.msra.mxu0 %v1554
    %1622 = vmatprep.subr.mxu0 %v1557
    %1623 = vmatpush1.msra.mxu0 %v1556
    %1624 = vmatprep.subr.mxu0 %v1559
    %1625 = vmatpush1.msra.mxu0 %v1558
    %1626 = vmatprep.subr.mxu0 %v1561
    %1627 = vmatpush1.msra.mxu0 %v1560
    %1628 = vmatprep.subr.mxu0 %v1563
    %1629 = vmatpush1.msra.mxu0 %v1562
    %1630 = vmatprep.subr.mxu0 %v1565
    %1631 = vmatpush1.msra.mxu0 %v1564
    %1632 = vmatprep.subr.mxu0 %v1567
    %1633 = vmatpush1.msra.mxu0 %v1566
    %1634 = vmatprep.subr.mxu0 %v1569
    %1635 = vmatpush1.msra.mxu0 %v1568
    %1636 = vmatprep.subr.mxu0 %v1571
    %1637 = vmatpush1.msra.mxu0 %v1570
    %1638 = vmatprep.subr.mxu0 %v1573
    %1639 = vmatpush1.msra.mxu0 %v1572
    %1640 = vmatprep.subr.mxu0 %v1575
    %1641 = vmatpush1.msra.mxu0 %v1574
    %1642 = vmatprep.subr.mxu0 %v1577
    %1643 = vmatpush1.msra.mxu0 %v1576
    %1644 = vmatprep.subr.mxu0 %v1579
    %1645 = vmatpush1.msra.mxu0 %v1578
    %1646 = vmatprep.subr.mxu0 %v1581
    %1647 = vmatpush1.msra.mxu0 %v1580
    %1648 = vmatprep.subr.mxu0 %v1583
    %1649 = vmatpush1.msra.mxu0 %v1582
    %1650 = vmatprep.subr.mxu0 %v1585
    %1651 = vmatpush1.msra.mxu0 %v1584
    %1652 = vmatprep.subr.mxu0 %v1587
    %1653 = vmatpush1.msra.mxu0 %v1586
    %1654 = vmatprep.subr.mxu0 %v1589
    %1655 = vmatpush1.msra.mxu0 %v1588
    %1656 = vmatprep.subr.mxu0 0.0
    %1657 = vmatpush1.msra.mxu0 0.0
    %1658 = vmatprep.subr.mxu0 0.0
    %1659 = vmatpush1.msra.mxu0 0.0
    %1660 = vmatprep.subr.mxu0 0.0
    %1661 = vmatpush1.msra.mxu0 0.0
    %1662 = vmatprep.subr.mxu0 0.0
    %1663 = vmatpush1.msra.mxu0 0.0
    %1664 = vmatprep.subr.mxu0 0.0
    %1665 = vmatpush1.msra.mxu0 0.0
    %1666 = vmatprep.subr.mxu0 0.0
    %1667 = vmatpush1.msra.mxu0 0.0
    %1668 = vmatprep.subr.mxu0 0.0
    %1669 = vmatpush1.msra.mxu0 0.0
    %1670 = vmatprep.mubr.f32.mxu0 %v1604
    %1671 = vmatmul.mubr.f32.gmra.mrb[0].mxu0 %v1534
    %v1672 = vpop.f32.mrb[0].mxu0
    %v1673 = vadd.f32 %v1596, %v1672
    %v1674 = vpop.f32.mrb[0].mxu0
    %v1675 = vadd.f32 %v1600, %v1674
    %1676 = vdwg.mxu0
    %v1677 = vtanh.pop %v1673
    %v1678 = vtanh.pop %v1675
    %s1679 = smul.u32 %s1536, 7
    %s1680 = sshll.u32 %s1679, 4
    %1681 = dma.done %s172, %s1680
    %v1682 = vld [vmem:[#allocation3] sm:$0xff]
    %v1683 = vld [vmem:[#allocation3 + $0x8] sm:$0xff]
    %v1684 = vld [vmem:[#allocation3 + $0x10] sm:$0xff]
    %v1685 = vld [vmem:[#allocation3 + $0x18] sm:$0xff]
    %v1686 = vld [vmem:[#allocation3 + $0x20] sm:$0xff]
    %v1687 = vld [vmem:[#allocation3 + $0x28] sm:$0xff]
    %v1688 = vld [vmem:[#allocation3 + $0x30] sm:$0xff]
    %v1689 = vld [vmem:[#allocation3 + $0x38] sm:$0xff]
    %v1690 = vld [vmem:[#allocation3 + $0x40] sm:$0xff]
    %v1691 = vld [vmem:[#allocation3 + $0x48] sm:$0xff]
    %v1692 = vld [vmem:[#allocation3 + $0x50] sm:$0xff]
    %v1693 = vld [vmem:[#allocation3 + $0x58] sm:$0xff]
    %v1694 = vld [vmem:[#allocation3 + $0x60] sm:$0xff]
    %v1695 = vld [vmem:[#allocation3 + $0x68] sm:$0xff]
    %v1696 = vld [vmem:[#allocation3 + $0x70] sm:$0xff]
    %v1697 = vld [vmem:[#allocation3 + $0x78] sm:$0xff]
    %v1698 = vld [vmem:[#allocation3 + $0x80] sm:$0xff]
    %v1699 = vld [vmem:[#allocation3 + $0x88] sm:$0xff]
    %v1700 = vld [vmem:[#allocation3 + $0x90] sm:$0xff]
    %v1701 = vld [vmem:[#allocation3 + $0x98] sm:$0xff]
    %v1702 = vld [vmem:[#allocation3 + $0xa0] sm:$0xff]
    %v1703 = vld [vmem:[#allocation3 + $0xa8] sm:$0xff]
    %v1704 = vld [vmem:[#allocation3 + $0xb0] sm:$0xff]
    %v1705 = vld [vmem:[#allocation3 + $0xb8] sm:$0xff]
    %v1706 = vld [vmem:[#allocation3 + $0xc0] sm:$0xff]
    %v1707 = vld [vmem:[#allocation3 + $0xc8] sm:$0xff]
    %v1708 = vld [vmem:[#allocation3 + $0xd0] sm:$0xff]
    %v1709 = vld [vmem:[#allocation3 + $0xd8] sm:$0xff]
    %v1710 = vld [vmem:[#allocation3 + $0xe0] sm:$0xff]
    %v1711 = vld [vmem:[#allocation3 + $0xe8] sm:$0xff]
    %v1712 = vld [vmem:[#allocation3 + $0xf0] sm:$0xff]
    %v1713 = vld [vmem:[#allocation3 + $0xf8] sm:$0xff]
    %v1714 = vld [vmem:[#allocation3 + $0x100] sm:$0xff]
    %v1715 = vld [vmem:[#allocation3 + $0x108] sm:$0xff]
    %v1716 = vld [vmem:[#allocation3 + $0x110] sm:$0xff]
    %v1717 = vld [vmem:[#allocation3 + $0x118] sm:$0xff]
    %v1718 = vld [vmem:[#allocation3 + $0x120] sm:$0xff]
    %v1719 = vld [vmem:[#allocation3 + $0x128] sm:$0xff]
    %v1720 = vld [vmem:[#allocation3 + $0x130] sm:$0xff]
    %v1721 = vld [vmem:[#allocation3 + $0x138] sm:$0xff]
    %v1722 = vld [vmem:[#allocation3 + $0x140] sm:$0xff]
    %v1723 = vld [vmem:[#allocation3 + $0x148] sm:$0xff]
    %v1724 = vld [vmem:[#allocation3 + $0x150] sm:$0xff]
    %v1725 = vld [vmem:[#allocation3 + $0x158] sm:$0xff]
    %v1726 = vld [vmem:[#allocation3 + $0x160] sm:$0xff]
    %v1727 = vld [vmem:[#allocation3 + $0x168] sm:$0xff]
    %v1728 = vld [vmem:[#allocation3 + $0x170] sm:$0xff]
    %v1729 = vld [vmem:[#allocation3 + $0x178] sm:$0xff]
    %v1730 = vld [vmem:[#allocation3 + $0x180] sm:$0xff]
    %v1731 = vld [vmem:[#allocation3 + $0x188] sm:$0xff]
    %v1732 = vld [vmem:[#allocation3 + $0x190] sm:$0xff]
    %v1733 = vld [vmem:[#allocation3 + $0x198] sm:$0xff]
    %v1734 = vld [vmem:[#allocation3 + $0x1a0] sm:$0xff]
    %v1735 = vld [vmem:[#allocation3 + $0x1a8] sm:$0xff]
    %v1736 = vld [vmem:[#allocation3 + $0x1b0] sm:$0xff]
    %v1737 = vld [vmem:[#allocation3 + $0x1b8] sm:$0xff]
    %v1738 = vld [vmem:[#allocation3 + $0x1c0] sm:$0xff]
    %v1739 = vld [vmem:[#allocation3 + $0x1c8] sm:$0xff]
    %v1740 = vld [vmem:[#allocation3 + $0x1d0] sm:$0xff]
    %v1741 = vld [vmem:[#allocation3 + $0x1d8] sm:$0xff]
    %v1742 = vld [vmem:[#allocation3 + $0x1e0] sm:$0xff]
    %v1743 = vld [vmem:[#allocation3 + $0x1e8] sm:$0xff]
    %v1744 = vld [vmem:[#allocation3 + $0x1f0] sm:$0xff]
    %v1745 = vld [vmem:[#allocation3 + $0x1f8] sm:$0xff]
    %v1746 = vld [vmem:[#allocation3 + $0x200] sm:$0xff]
    %v1747 = vld [vmem:[#allocation3 + $0x208] sm:$0xff]
    %v1748 = vld [vmem:[#allocation3 + $0x210] sm:$0xff]
    %v1749 = vld [vmem:[#allocation3 + $0x218] sm:$0xff]
    %v1750 = vld [vmem:[#allocation3 + $0x220] sm:$0xff]
    %v1751 = vld [vmem:[#allocation3 + $0x228] sm:$0xff]
    %v1752 = vld [vmem:[#allocation3 + $0x230] sm:$0xff]
    %v1753 = vld [vmem:[#allocation3 + $0x238] sm:$0xff]
    %v1754 = vld [vmem:[#allocation3 + $0x240] sm:$0xff]
    %v1755 = vld [vmem:[#allocation3 + $0x248] sm:$0xff]
    %v1756 = vld [vmem:[#allocation3 + $0x250] sm:$0xff]
    %v1757 = vld [vmem:[#allocation3 + $0x258] sm:$0xff]
    %v1758 = vld [vmem:[#allocation3 + $0x260] sm:$0xff]
    %v1759 = vld [vmem:[#allocation3 + $0x268] sm:$0xff]
    %v1760 = vld [vmem:[#allocation3 + $0x270] sm:$0xff]
    %v1761 = vld [vmem:[#allocation3 + $0x278] sm:$0xff]
    %v1762 = vld [vmem:[#allocation3 + $0x280] sm:$0xff]
    %v1763 = vld [vmem:[#allocation3 + $0x288] sm:$0xff]
    %v1764 = vld [vmem:[#allocation3 + $0x290] sm:$0xff]
    %v1765 = vld [vmem:[#allocation3 + $0x298] sm:$0xff]
    %v1766 = vld [vmem:[#allocation3 + $0x2a0] sm:$0xff]
    %v1767 = vld [vmem:[#allocation3 + $0x2a8] sm:$0xff]
    %v1768 = vld [vmem:[#allocation3 + $0x2b0] sm:$0xff]
    %v1769 = vld [vmem:[#allocation3 + $0x2b8] sm:$0xff]
    %v1770 = vld [vmem:[#allocation3 + $0x2c0] sm:$0xff]
    %v1771 = vld [vmem:[#allocation3 + $0x2c8] sm:$0xff]
    %v1772 = vld [vmem:[#allocation3 + $0x2d0] sm:$0xff]
    %v1773 = vld [vmem:[#allocation3 + $0x2d8] sm:$0xff]
    %v1774 = vld [vmem:[#allocation3 + $0x2e0] sm:$0xff]
    %v1775 = vld [vmem:[#allocation3 + $0x2e8] sm:$0xff]
    %v1776 = vld [vmem:[#allocation3 + $0x2f0] sm:$0xff]
    %v1777 = vld [vmem:[#allocation3 + $0x2f8] sm:$0xff]
    %v1778 = vld [vmem:[#allocation3 + $0x300] sm:$0xff]
    %v1779 = vld [vmem:[#allocation3 + $0x308] sm:$0xff]
    %v1780 = vld [vmem:[#allocation3 + $0x310] sm:$0xff]
    %v1781 = vld [vmem:[#allocation3 + $0x318] sm:$0xff]
    %v1782 = vld [vmem:[#allocation3 + $0x320] sm:$0xff]
    %v1783 = vld [vmem:[#allocation3 + $0x328] sm:$0xff]
    %v1784 = vld [vmem:[#allocation3 + $0x330] sm:$0xff]
    %v1785 = vld [vmem:[#allocation3 + $0x338] sm:$0xff]
    %v1786 = vld [vmem:[#allocation3 + $0x340] sm:$0xff]
    %v1787 = vld [vmem:[#allocation3 + $0x348] sm:$0xff]
    %v1788 = vld [vmem:[#allocation3 + $0x350] sm:$0xff]
    %v1789 = vld [vmem:[#allocation3 + $0x358] sm:$0xff]
    %v1790 = vld [vmem:[#allocation3 + $0x360] sm:$0xff]
    %v1791 = vld [vmem:[#allocation3 + $0x368] sm:$0xff]
    %v1792 = vld [vmem:[#allocation3 + $0x370] sm:$0xff]
    %v1793 = vld [vmem:[#allocation3 + $0x378] sm:$0xff]
    %v1794 = vld [vmem:[#allocation3 + $0x380] sm:$0xff]
    %v1795 = vld [vmem:[#allocation3 + $0x388] sm:$0xff]
    %v1796 = vld [vmem:[#allocation3 + $0x390] sm:$0xff]
    %v1797 = vld [vmem:[#allocation3 + $0x398] sm:$0xff]
    %v1798 = vld [vmem:[#allocation3 + $0x3a0] sm:$0xff]
    %v1799 = vld [vmem:[#allocation3 + $0x3a8] sm:$0xff]
    %v1800 = vld [vmem:[#allocation3 + $0x3b0] sm:$0xff]
    %v1801 = vld [vmem:[#allocation3 + $0x3b8] sm:$0xff]
    %v1802 = vld [vmem:[#allocation3 + $0x3c0] sm:$0xff]
    %v1803 = vld [vmem:[#allocation3 + $0x3c8] sm:$0xff]
    %v1804 = vld [vmem:[#allocation3 + $0x3d0] sm:$0xff]
    %v1805 = vld [vmem:[#allocation3 + $0x3d8] sm:$0xff]
    %v1806 = vld [vmem:[#allocation3 + $0x3e0] sm:$0xff]
    %v1807 = vld [vmem:[#allocation3 + $0x3e8] sm:$0xff]
    %v1808 = vld [vmem:[#allocation3 + $0x3f0] sm:$0xff]
    %v1809 = vld [vmem:[#allocation3 + $0x3f8] sm:$0xff]
    %v1810 = vld [vmem:[#allocation3 + $0x400] sm:$0xff]
    %v1811 = vld [vmem:[#allocation3 + $0x408] sm:$0xff]
    %v1812 = vld [vmem:[#allocation3 + $0x410] sm:$0xff]
    %v1813 = vld [vmem:[#allocation3 + $0x418] sm:$0xff]
    %v1814 = vld [vmem:[#allocation3 + $0x420] sm:$0xff]
    %v1815 = vld [vmem:[#allocation3 + $0x428] sm:$0xff]
    %v1816 = vld [vmem:[#allocation3 + $0x430] sm:$0xff]
    %v1817 = vld [vmem:[#allocation3 + $0x438] sm:$0xff]
    %v1818 = vld [vmem:[#allocation3 + $0x440] sm:$0xff]
    %v1819 = vld [vmem:[#allocation3 + $0x448] sm:$0xff]
    %v1820 = vld [vmem:[#allocation3 + $0x450] sm:$0xff]
    %v1821 = vld [vmem:[#allocation3 + $0x458] sm:$0xff]
    %v1822 = vld [vmem:[#allocation3 + $0x460] sm:$0xff]
    %v1823 = vld [vmem:[#allocation3 + $0x468] sm:$0xff]
    %v1824 = vld [vmem:[#allocation3 + $0x470] sm:$0xff]
    %v1825 = vld [vmem:[#allocation3 + $0x478] sm:$0xff]
    %v1826 = vld [vmem:[#allocation3 + $0x480] sm:$0xff]
    %v1827 = vld [vmem:[#allocation3 + $0x488] sm:$0xff]
    %v1828 = vld [vmem:[#allocation3 + $0x490] sm:$0xff]
    %v1829 = vld [vmem:[#allocation3 + $0x498] sm:$0xff]
    %v1830 = vld [vmem:[#allocation3 + $0x4a0] sm:$0xff]
    %v1831 = vld [vmem:[#allocation3 + $0x4a8] sm:$0xff]
    %v1832 = vld [vmem:[#allocation3 + $0x4b0] sm:$0xff]
    %v1833 = vld [vmem:[#allocation3 + $0x4b8] sm:$0xff]
    %v1834 = vld [vmem:[#allocation3 + $0x4c0] sm:$0xff]
    %v1835 = vld [vmem:[#allocation3 + $0x4c8] sm:$0xff]
    %v1836 = vld [vmem:[#allocation3 + $0x4d0] sm:$0xff]
    %v1837 = vld [vmem:[#allocation3 + $0x4d8] sm:$0xff]
    %v1838 = vld [vmem:[#allocation3 + $0x4e0] sm:$0xff]
    %v1839 = vld [vmem:[#allocation3 + $0x4e8] sm:$0xff]
    %v1840 = vld [vmem:[#allocation3 + $0x4f0] sm:$0xff]
    %v1841 = vld [vmem:[#allocation3 + $0x4f8] sm:$0xff]
    %v1842 = vld [vmem:[#allocation3 + $0x500] sm:$0xff]
    %v1843 = vld [vmem:[#allocation3 + $0x508] sm:$0xff]
    %v1844 = vld [vmem:[#allocation3 + $0x510] sm:$0xff]
    %v1845 = vld [vmem:[#allocation3 + $0x518] sm:$0xff]
    %v1846 = vld [vmem:[#allocation3 + $0x520] sm:$0xff]
    %v1847 = vld [vmem:[#allocation3 + $0x528] sm:$0xff]
    %v1848 = vld [vmem:[#allocation3 + $0x530] sm:$0xff]
    %v1849 = vld [vmem:[#allocation3 + $0x538] sm:$0xff]
    %v1850 = vld [vmem:[#allocation3 + $0x540] sm:$0xff]
    %v1851 = vld [vmem:[#allocation3 + $0x548] sm:$0xff]
    %v1852 = vld [vmem:[#allocation3 + $0x550] sm:$0xff]
    %v1853 = vld [vmem:[#allocation3 + $0x558] sm:$0xff]
    %v1854 = vld [vmem:[#allocation3 + $0x560] sm:$0xff]
    %v1855 = vld [vmem:[#allocation3 + $0x568] sm:$0xff]
    %v1856 = vld [vmem:[#allocation3 + $0x570] sm:$0xff]
    %s1857 = scalar_lea.vmem %s6, 5
    %v1858 = vld [vmem:[%s1857] ss:$8 sm:$0xf]
    %v1859 = vld [vmem:[%s1857] ss:$8 sm:$0xf0]
    %v1860 = vor.u32 %v1858, %v1859
    %v1862 = vlaneseq
    %v1863 = vshrl.u32 %v1862, 7
    %v1864 = vsub.s32 0, %v1863
    %v1865 = vrot.slane %v1860, %v1864
    %v1866 = vlaneseq
    %v1867 = vshrl.u32 %v1866, 7
    %v1868 = vsub.s32 1, %v1867
    %v1869 = vrot.slane %v1860, %v1868
    %v1870 = vlaneseq
    %v1871 = vshrl.u32 %v1870, 7
    %v1872 = vsub.s32 2, %v1871
    %v1873 = vrot.slane %v1860, %v1872
    %v1874 = vlaneseq
    %v1875 = vshrl.u32 %v1874, 7
    %v1876 = vsub.s32 3, %v1875
    %v1877 = vrot.slane %v1860, %v1876
    %v1878 = vlaneseq
    %v1879 = vshrl.u32 %v1878, 7
    %v1880 = vsub.s32 4, %v1879
    %v1881 = vrot.slane %v1860, %v1880
    %v1882 = vlaneseq
    %v1883 = vshrl.u32 %v1882, 7
    %v1884 = vsub.s32 5, %v1883
    %v1885 = vrot.slane %v1860, %v1884
    %v1886 = vlaneseq
    %v1887 = vshrl.u32 %v1886, 7
    %v1888 = vsub.s32 6, %v1887
    %v1889 = vrot.slane %v1860, %v1888
    %v1898 = vsel %vm1166, %v1678, 0
    %1900 = vmatprep.subr.mxu0 %v1683
    %1901 = vmatpush1.msra.mxu0 %v1682
    %1902 = vmatprep.subr.mxu0 %v1690
    %1903 = vmatpush1.msra.mxu0 %v1689
    %1904 = vmatprep.subr.mxu0 %v1697
    %1905 = vmatpush1.msra.mxu0 %v1696
    %1906 = vmatprep.subr.mxu0 %v1704
    %1907 = vmatpush1.msra.mxu0 %v1703
    %1908 = vmatprep.subr.mxu0 %v1711
    %1909 = vmatpush1.msra.mxu0 %v1710
    %1910 = vmatprep.subr.mxu0 %v1718
    %1911 = vmatpush1.msra.mxu0 %v1717
    %1912 = vmatprep.subr.mxu0 %v1725
    %1913 = vmatpush1.msra.mxu0 %v1724
    %1914 = vmatprep.subr.mxu0 %v1732
    %1915 = vmatpush1.msra.mxu0 %v1731
    %1916 = vmatprep.subr.mxu0 %v1739
    %1917 = vmatpush1.msra.mxu0 %v1738
    %1918 = vmatprep.subr.mxu0 %v1746
    %1919 = vmatpush1.msra.mxu0 %v1745
    %1920 = vmatprep.subr.mxu0 %v1753
    %1921 = vmatpush1.msra.mxu0 %v1752
    %1922 = vmatprep.subr.mxu0 %v1760
    %1923 = vmatpush1.msra.mxu0 %v1759
    %1924 = vmatprep.subr.mxu0 %v1767
    %1925 = vmatpush1.msra.mxu0 %v1766
    %1926 = vmatprep.subr.mxu0 %v1774
    %1927 = vmatpush1.msra.mxu0 %v1773
    %1928 = vmatprep.subr.mxu0 %v1781
    %1929 = vmatpush1.msra.mxu0 %v1780
    %1930 = vmatprep.subr.mxu0 %v1788
    %1931 = vmatpush1.msra.mxu0 %v1787
    %1932 = vmatprep.subr.mxu0 %v1795
    %1933 = vmatpush1.msra.mxu0 %v1794
    %1934 = vmatprep.subr.mxu0 %v1802
    %1935 = vmatpush1.msra.mxu0 %v1801
    %1936 = vmatprep.subr.mxu0 %v1809
    %1937 = vmatpush1.msra.mxu0 %v1808
    %1938 = vmatprep.subr.mxu0 %v1816
    %1939 = vmatpush1.msra.mxu0 %v1815
    %1940 = vmatprep.subr.mxu0 %v1823
    %1941 = vmatpush1.msra.mxu0 %v1822
    %1942 = vmatprep.subr.mxu0 %v1830
    %1943 = vmatpush1.msra.mxu0 %v1829
    %1944 = vmatprep.subr.mxu0 %v1837
    %1945 = vmatpush1.msra.mxu0 %v1836
    %1946 = vmatprep.subr.mxu0 %v1844
    %1947 = vmatpush1.msra.mxu0 %v1843
    %1948 = vmatprep.subr.mxu0 %v1851
    %1949 = vmatpush1.msra.mxu0 %v1850
    %1950 = vmatprep.subr.mxu0 0.0
    %1951 = vmatpush1.msra.mxu0 0.0
    %1952 = vmatprep.subr.mxu0 0.0
    %1953 = vmatpush1.msra.mxu0 0.0
    %1954 = vmatprep.subr.mxu0 0.0
    %1955 = vmatpush1.msra.mxu0 0.0
    %1956 = vmatprep.subr.mxu0 0.0
    %1957 = vmatpush1.msra.mxu0 0.0
    %1958 = vmatprep.subr.mxu0 0.0
    %1959 = vmatpush1.msra.mxu0 0.0
    %1960 = vmatprep.subr.mxu0 0.0
    %1961 = vmatpush1.msra.mxu0 0.0
    %1962 = vmatprep.subr.mxu0 0.0
    %1963 = vmatpush1.msra.mxu0 0.0
    %1964 = vmatprep.mubr.f32.mxu0 %v1898
    %1965 = vmatmul.mubr.f32.gmra.mrb[0].mxu0 %v1677
    %v1966 = vpop.f32.mrb[0].mxu0
    %v1967 = vadd.f32 %v1865, %v1966
    %v1968 = vpop.f32.mrb[0].mxu0
    %v1969 = vadd.f32 %v1869, %v1968
    %1970 = vdwg.mxu0
    %1971 = vmatprep.subr.mxu0 %v1685
    %1972 = vmatpush1.msra.mxu0 %v1684
    %1973 = vmatprep.subr.mxu0 %v1692
    %1974 = vmatpush1.msra.mxu0 %v1691
    %1975 = vmatprep.subr.mxu0 %v1699
    %1976 = vmatpush1.msra.mxu0 %v1698
    %1977 = vmatprep.subr.mxu0 %v1706
    %1978 = vmatpush1.msra.mxu0 %v1705
    %1979 = vmatprep.subr.mxu0 %v1713
    %1980 = vmatpush1.msra.mxu0 %v1712
    %1981 = vmatprep.subr.mxu0 %v1720
    %1982 = vmatpush1.msra.mxu0 %v1719
    %1983 = vmatprep.subr.mxu0 %v1727
    %1984 = vmatpush1.msra.mxu0 %v1726
    %1985 = vmatprep.subr.mxu0 %v1734
    %1986 = vmatpush1.msra.mxu0 %v1733
    %1987 = vmatprep.subr.mxu0 %v1741
    %1988 = vmatpush1.msra.mxu0 %v1740
    %1989 = vmatprep.subr.mxu0 %v1748
    %1990 = vmatpush1.msra.mxu0 %v1747
    %1991 = vmatprep.subr.mxu0 %v1755
    %1992 = vmatpush1.msra.mxu0 %v1754
    %1993 = vmatprep.subr.mxu0 %v1762
    %1994 = vmatpush1.msra.mxu0 %v1761
    %1995 = vmatprep.subr.mxu0 %v1769
    %1996 = vmatpush1.msra.mxu0 %v1768
    %1997 = vmatprep.subr.mxu0 %v1776
    %1998 = vmatpush1.msra.mxu0 %v1775
    %1999 = vmatprep.subr.mxu0 %v1783
    %2000 = vmatpush1.msra.mxu0 %v1782
    %2001 = vmatprep.subr.mxu0 %v1790
    %2002 = vmatpush1.msra.mxu0 %v1789
    %2003 = vmatprep.subr.mxu0 %v1797
    %2004 = vmatpush1.msra.mxu0 %v1796
    %2005 = vmatprep.subr.mxu0 %v1804
    %2006 = vmatpush1.msra.mxu0 %v1803
    %2007 = vmatprep.subr.mxu0 %v1811
    %2008 = vmatpush1.msra.mxu0 %v1810
    %2009 = vmatprep.subr.mxu0 %v1818
    %2010 = vmatpush1.msra.mxu0 %v1817
    %2011 = vmatprep.subr.mxu0 %v1825
    %2012 = vmatpush1.msra.mxu0 %v1824
    %2013 = vmatprep.subr.mxu0 %v1832
    %2014 = vmatpush1.msra.mxu0 %v1831
    %2015 = vmatprep.subr.mxu0 %v1839
    %2016 = vmatpush1.msra.mxu0 %v1838
    %2017 = vmatprep.subr.mxu0 %v1846
    %2018 = vmatpush1.msra.mxu0 %v1845
    %2019 = vmatprep.subr.mxu0 %v1853
    %2020 = vmatpush1.msra.mxu0 %v1852
    %2021 = vmatprep.subr.mxu0 0.0
    %2022 = vmatpush1.msra.mxu0 0.0
    %2023 = vmatprep.subr.mxu0 0.0
    %2024 = vmatpush1.msra.mxu0 0.0
    %2025 = vmatprep.subr.mxu0 0.0
    %2026 = vmatpush1.msra.mxu0 0.0
    %2027 = vmatprep.subr.mxu0 0.0
    %2028 = vmatpush1.msra.mxu0 0.0
    %2029 = vmatprep.subr.mxu0 0.0
    %2030 = vmatpush1.msra.mxu0 0.0
    %2031 = vmatprep.subr.mxu0 0.0
    %2032 = vmatpush1.msra.mxu0 0.0
    %2033 = vmatprep.subr.mxu0 0.0
    %2034 = vmatpush1.msra.mxu0 0.0
    %2035 = vmatprep.mubr.f32.mxu0 %v1898
    %2036 = vmatmul.mubr.f32.gmra.mrb[0].mxu0 %v1677
    %v2037 = vpop.f32.mrb[0].mxu0
    %v2038 = vadd.f32 %v1873, %v2037
    %v2039 = vpop.f32.mrb[0].mxu0
    %v2040 = vadd.f32 %v1877, %v2039
    %2041 = vdwg.mxu0
    %2042 = vmatprep.subr.mxu0 %v1687
    %2043 = vmatpush1.msra.mxu0 %v1686
    %2044 = vmatprep.subr.mxu0 %v1694
    %2045 = vmatpush1.msra.mxu0 %v1693
    %2046 = vmatprep.subr.mxu0 %v1701
    %2047 = vmatpush1.msra.mxu0 %v1700
    %2048 = vmatprep.subr.mxu0 %v1708
    %2049 = vmatpush1.msra.mxu0 %v1707
    %2050 = vmatprep.subr.mxu0 %v1715
    %2051 = vmatpush1.msra.mxu0 %v1714
    %2052 = vmatprep.subr.mxu0 %v1722
    %2053 = vmatpush1.msra.mxu0 %v1721
    %2054 = vmatprep.subr.mxu0 %v1729
    %2055 = vmatpush1.msra.mxu0 %v1728
    %2056 = vmatprep.subr.mxu0 %v1736
    %2057 = vmatpush1.msra.mxu0 %v1735
    %2058 = vmatprep.subr.mxu0 %v1743
    %2059 = vmatpush1.msra.mxu0 %v1742
    %2060 = vmatprep.subr.mxu0 %v1750
    %2061 = vmatpush1.msra.mxu0 %v1749
    %2062 = vmatprep.subr.mxu0 %v1757
    %2063 = vmatpush1.msra.mxu0 %v1756
    %2064 = vmatprep.subr.mxu0 %v1764
    %2065 = vmatpush1.msra.mxu0 %v1763
    %2066 = vmatprep.subr.mxu0 %v1771
    %2067 = vmatpush1.msra.mxu0 %v1770
    %2068 = vmatprep.subr.mxu0 %v1778
    %2069 = vmatpush1.msra.mxu0 %v1777
    %2070 = vmatprep.subr.mxu0 %v1785
    %2071 = vmatpush1.msra.mxu0 %v1784
    %2072 = vmatprep.subr.mxu0 %v1792
    %2073 = vmatpush1.msra.mxu0 %v1791
    %2074 = vmatprep.subr.mxu0 %v1799
    %2075 = vmatpush1.msra.mxu0 %v1798
    %2076 = vmatprep.subr.mxu0 %v1806
    %2077 = vmatpush1.msra.mxu0 %v1805
    %2078 = vmatprep.subr.mxu0 %v1813
    %2079 = vmatpush1.msra.mxu0 %v1812
    %2080 = vmatprep.subr.mxu0 %v1820
    %2081 = vmatpush1.msra.mxu0 %v1819
    %2082 = vmatprep.subr.mxu0 %v1827
    %2083 = vmatpush1.msra.mxu0 %v1826
    %2084 = vmatprep.subr.mxu0 %v1834
    %2085 = vmatpush1.msra.mxu0 %v1833
    %2086 = vmatprep.subr.mxu0 %v1841
    %2087 = vmatpush1.msra.mxu0 %v1840
    %2088 = vmatprep.subr.mxu0 %v1848
    %2089 = vmatpush1.msra.mxu0 %v1847
    %2090 = vmatprep.subr.mxu0 %v1855
    %2091 = vmatpush1.msra.mxu0 %v1854
    %2092 = vmatprep.subr.mxu0 0.0
    %2093 = vmatpush1.msra.mxu0 0.0
    %2094 = vmatprep.subr.mxu0 0.0
    %2095 = vmatpush1.msra.mxu0 0.0
    %2096 = vmatprep.subr.mxu0 0.0
    %2097 = vmatpush1.msra.mxu0 0.0
    %2098 = vmatprep.subr.mxu0 0.0
    %2099 = vmatpush1.msra.mxu0 0.0
    %2100 = vmatprep.subr.mxu0 0.0
    %2101 = vmatpush1.msra.mxu0 0.0
    %2102 = vmatprep.subr.mxu0 0.0
    %2103 = vmatpush1.msra.mxu0 0.0
    %2104 = vmatprep.subr.mxu0 0.0
    %2105 = vmatpush1.msra.mxu0 0.0
    %2106 = vmatprep.mubr.f32.mxu0 %v1898
    %2107 = vmatmul.mubr.f32.gmra.mrb[0].mxu0 %v1677
    %v2108 = vpop.f32.mrb[0].mxu0
    %v2109 = vadd.f32 %v1881, %v2108
    %v2110 = vpop.f32.mrb[0].mxu0
    %v2111 = vadd.f32 %v1885, %v2110
    %2112 = vdwg.mxu0
    %2113 = vmatprep.subr.mxu0 0.0
    %2114 = vmatpush1.msra.mxu0 %v1688
    %2115 = vmatprep.subr.mxu0 0.0
    %2116 = vmatpush1.msra.mxu0 %v1695
    %2117 = vmatprep.subr.mxu0 0.0
    %2118 = vmatpush1.msra.mxu0 %v1702
    %2119 = vmatprep.subr.mxu0 0.0
    %2120 = vmatpush1.msra.mxu0 %v1709
    %2121 = vmatprep.subr.mxu0 0.0
    %2122 = vmatpush1.msra.mxu0 %v1716
    %2123 = vmatprep.subr.mxu0 0.0
    %2124 = vmatpush1.msra.mxu0 %v1723
    %2125 = vmatprep.subr.mxu0 0.0
    %2126 = vmatpush1.msra.mxu0 %v1730
    %2127 = vmatprep.subr.mxu0 0.0
    %2128 = vmatpush1.msra.mxu0 %v1737
    %2129 = vmatprep.subr.mxu0 0.0
    %2130 = vmatpush1.msra.mxu0 %v1744
    %2131 = vmatprep.subr.mxu0 0.0
    %2132 = vmatpush1.msra.mxu0 %v1751
    %2133 = vmatprep.subr.mxu0 0.0
    %2134 = vmatpush1.msra.mxu0 %v1758
    %2135 = vmatprep.subr.mxu0 0.0
    %2136 = vmatpush1.msra.mxu0 %v1765
    %2137 = vmatprep.subr.mxu0 0.0
    %2138 = vmatpush1.msra.mxu0 %v1772
    %2139 = vmatprep.subr.mxu0 0.0
    %2140 = vmatpush1.msra.mxu0 %v1779
    %2141 = vmatprep.subr.mxu0 0.0
    %2142 = vmatpush1.msra.mxu0 %v1786
    %2143 = vmatprep.subr.mxu0 0.0
    %2144 = vmatpush1.msra.mxu0 %v1793
    %2145 = vmatprep.subr.mxu0 0.0
    %2146 = vmatpush1.msra.mxu0 %v1800
    %2147 = vmatprep.subr.mxu0 0.0
    %2148 = vmatpush1.msra.mxu0 %v1807
    %2149 = vmatprep.subr.mxu0 0.0
    %2150 = vmatpush1.msra.mxu0 %v1814
    %2151 = vmatprep.subr.mxu0 0.0
    %2152 = vmatpush1.msra.mxu0 %v1821
    %2153 = vmatprep.subr.mxu0 0.0
    %2154 = vmatpush1.msra.mxu0 %v1828
    %2155 = vmatprep.subr.mxu0 0.0
    %2156 = vmatpush1.msra.mxu0 %v1835
    %2157 = vmatprep.subr.mxu0 0.0
    %2158 = vmatpush1.msra.mxu0 %v1842
    %2159 = vmatprep.subr.mxu0 0.0
    %2160 = vmatpush1.msra.mxu0 %v1849
    %2161 = vmatprep.subr.mxu0 0.0
    %2162 = vmatpush1.msra.mxu0 %v1856
    %2163 = vmatprep.subr.mxu0 0.0
    %2164 = vmatpush1.msra.mxu0 0.0
    %2165 = vmatprep.subr.mxu0 0.0
    %2166 = vmatpush1.msra.mxu0 0.0
    %2167 = vmatprep.subr.mxu0 0.0
    %2168 = vmatpush1.msra.mxu0 0.0
    %2169 = vmatprep.subr.mxu0 0.0
    %2170 = vmatpush1.msra.mxu0 0.0
    %2171 = vmatprep.subr.mxu0 0.0
    %2172 = vmatpush1.msra.mxu0 0.0
    %2173 = vmatprep.subr.mxu0 0.0
    %2174 = vmatpush1.msra.mxu0 0.0
    %2175 = vmatprep.subr.mxu0 0.0
    %2176 = vmatpush1.msra.mxu0 0.0
    %2177 = vmatprep.mubr.f32.mxu0 %v1898
    %2178 = vmatmul.mubr.f32.gmra.mrb[0].mxu0 %v1677
    %v2179 = vpop.f32.mrb[0].mxu0
    %v2180 = vadd.f32 %v1889, %v2179
    %v2181 = vpop.f32.mrb[0].mxu0
    %2182 = vdwg.mxu0
    %2183 = vst [vmem:[#allocation5] sm:$0xff] %v1967
    %2184 = vst [vmem:[#allocation5 + $0x8] sm:$0xff] %v1969
    %2185 = vst [vmem:[#allocation5 + $0x10] sm:$0xff] %v2038
    %2186 = vst [vmem:[#allocation5 + $0x18] sm:$0xff] %v2040
    %2187 = vst [vmem:[#allocation5 + $0x20] sm:$0xff] %v2109
    %2188 = vst [vmem:[#allocation5 + $0x28] sm:$0xff] %v2111
    %2189 = vst [vmem:[#allocation5 + $0x30] sm:$0xff] %v2180
    // Predicated region
    $region98: #{tpu_custom_call.1} parent=1 // pred_check
      _
    $region99: #{tpu_custom_call.1} parent=1 // pred_check_branch
      %2191 = sbr.rel (0) target = $region101
    $region100: #{tpu_custom_call.1} parent=1 // pred_region
      %s2193 = ssub.s32 896, 896
      %2194 = vsyncadd [#allocation6], %s2193
      %s2196 = sshll.u32 [#allocation5], 4
      %s2197 = int_to_ptr.vmem [resolvable:$true] %s2196
      %2199 = dma.vmem_to_hbm [thread:$0]  %s2197, 896, %s9, [#allocation6]
    $region101: #{tpu_custom_call.1} parent=1 // pred_fallthru
      _
    // Predicated region
    $region102: #{tpu_custom_call.1} parent=1 // pred_check
      _
    $region103: #{tpu_custom_call.1} parent=1 // pred_check_branch
      %2201 = sbr.rel (0) target = $region105
    $region104: #{tpu_custom_call.1} parent=1 // pred_region
      %s2203 = ssub.s32 64, 64
      %2204 = vsyncadd [#allocation8], %s2203
      %s2206 = sshll.u32 [#allocation7], 4
      %s2207 = int_to_ptr.vmem [resolvable:$true] %s2206
      %2209 = dma.vmem_to_hbm [thread:$0]  %s2207, 64, %s10, [#allocation8]
    $region105: #{tpu_custom_call.1} parent=1 // pred_fallthru
      _
    // Predicated region
    $region106: #{tpu_custom_call.1} parent=1 // pred_check
      _
    $region107: #{tpu_custom_call.1} parent=1 // pred_check_branch
      %2211 = sbr.rel (0) target = $region109
    $region108: #{tpu_custom_call.1} parent=1 // pred_region
      %2212 = dma.done [#allocation6], 896
    $region109: #{tpu_custom_call.1} parent=1 // pred_fallthru
      _
    // Predicated region
    $region110: #{tpu_custom_call.1} parent=1 // pred_check
      _
    $region111: #{tpu_custom_call.1} parent=1 // pred_check_branch
      %2214 = sbr.rel (0) target = $region113
    $region112: #{tpu_custom_call.1} parent=1 // pred_region
      %2215 = dma.done [#allocation8], 64
    $region113: #{tpu_custom_call.1} parent=1 // pred_fallthru
      _
    %2216 = vsyncpa [#allocation6], 1
    %2217 = vsyncpa [#allocation8], 1
  %2218 = vsyncmov [#allocation4]
  %s2219 = vpop.sfrf %2218
  %p2220 = scmp.eq.s32.totalorder %s2219, 0
  %p2221 = pneg %p2220
  %2223 = shalt.err (%p2221)
  %s2224 = scalar_lea.sflag [#allocation4], 1
  %2225 = vsyncmov %s2224
  %s2226 = vpop.sfrf %2225
  %p2227 = scmp.eq.s32.totalorder %s2226, 0
  %p2228 = pneg %p2227
  %2230 = shalt.err (%p2228)

</llo_original>
